<compile_context>
chip_gen: v7x
topology: tpu7x:2x2x1
jax: 0.10.0
libtpu: 0.0.40
codegen_flags: <defaults>
</compile_context>

<pallas_src>
import jax
import jax.numpy as jnp
from jax.experimental import pallas as pl
from jax.experimental.pallas import tpu as pltpu


# --------------------------------------------------------------------------
# Pallas kernel: fused [1x1 conv + FrozenBN + LeakyReLU(0.1)] x 2, NCHW-native
# --------------------------------------------------------------------------
def _p5_head_kernel(x_ref, w1_ref, b1_ref, w2_ref, b2_ref, o_ref):
    # x_ref:  (512, ts)  f32 activation tile (channels=sublanes, spatial=lanes)
    # w1_ref: (256, 512) bf16, FrozenBN scale pre-folded
    # b1_ref: (256, 1)   f32 folded FrozenBN bias
    # w2_ref: (128, 256) bf16, FrozenBN scale pre-folded
    # b2_ref: (128, 1)   f32 folded FrozenBN bias
    # o_ref:  (128, ts)  f32 -- already in NCHW channel-major layout
    x = x_ref[...].astype(jnp.bfloat16)        # f32 read, bf16 pack under MXU/DMA slack
    y1 = jnp.dot(w1_ref[...], x, preferred_element_type=jnp.float32)   # (256, ts)
    y1 = y1 + b1_ref[...]
    y1 = jnp.maximum(y1, 0.1 * y1)                                     # LeakyReLU(0.1)
    y2 = jnp.dot(w2_ref[...], y1.astype(jnp.bfloat16),
                 preferred_element_type=jnp.float32)                   # (128, ts)
    y2 = y2 + b2_ref[...]
    o_ref[...] = jnp.maximum(y2, 0.1 * y2).astype(o_ref.dtype)


def _choose_ts(S, N, ts_max=2048):
    """Spatial (lane) tile: full extent S, or a multiple of 128 capped at
    ts_max; prefer >= 4 total grid steps (>= 2 per v7x TensorCore) when the
    spatial extent is large enough to split into lane-aligned tiles."""
    ts = min(S, ts_max)
    if ts < S:
        ts = max(128, (ts // 128) * 128)
    min_tiles = pl.cdiv(4, max(N, 1))
    if pl.cdiv(S, ts) < min_tiles and S >= 128 * min_tiles:
        ts = max(128, (pl.cdiv(S, min_tiles) + 127) // 128 * 128)
    return ts


def p5_head(x, w1, b1, w2, b2, *, ts_max=2048):
    """x: (N, 512, S) f32 NCHW(-flat)  ->  (N, 128, S) f32 NCHW(-flat).

    Computes lrelu(W2f @ lrelu(W1f @ x + b1) + b2) per spatial position."""
    N, Cin, S = x.shape
    Cmid = w1.shape[0]
    Cout = w2.shape[0]
    ts = _choose_ts(S, N, ts_max)
    # Working set at ts=2048 is ~15 MiB double-buffered -> well under the
    # 32 MiB default scoped VMEM on v5e/v6e/v7x; no vmem_limit_bytes needed.
    return pl.pallas_call(
        _p5_head_kernel,
        out_shape=jax.ShapeDtypeStruct((N, Cout, S), jnp.float32),
        grid_spec=pltpu.PrefetchScalarGridSpec(
            num_scalar_prefetch=0,
            grid=(N, pl.cdiv(S, ts)),
            in_specs=[
                pl.BlockSpec((None, Cin, ts), lambda n, j: (n, 0, j)),
                pl.BlockSpec((Cmid, Cin), lambda n, j: (0, 0)),
                pl.BlockSpec((Cmid, 1), lambda n, j: (0, 0)),
                pl.BlockSpec((Cout, Cmid), lambda n, j: (0, 0)),
                pl.BlockSpec((Cout, 1), lambda n, j: (0, 0)),
            ],
            out_specs=pl.BlockSpec((None, Cout, ts), lambda n, j: (n, 0, j)),
        ),
        compiler_params=pltpu.CompilerParams(
            dimension_semantics=("parallel", "parallel")),
    )(x, w1, b1, w2, b2)


# --------------------------------------------------------------------------
# Module pieces (parameter setup + glue in plain JAX)
# --------------------------------------------------------------------------
def make_frozen_bn(n, key=None):
    # register_buffer defaults from FrozenBatchNorm2d.__init__ (or random
    # "loaded" stats when a key is given, to actually exercise the folding).
    if key is None:
        return dict(weight=jnp.ones((n,), jnp.float32),
                    bias=jnp.zeros((n,), jnp.float32),
                    running_mean=jnp.zeros((n,), jnp.float32),
                    running_var=jnp.ones((n,), jnp.float32))
    k1, k2, k3, k4 = jax.random.split(key, 4)
    return dict(weight=jax.random.uniform(k1, (n,), jnp.float32, 0.5, 1.5),
                bias=0.1 * jax.random.normal(k2, (n,), jnp.float32),
                running_mean=0.1 * jax.random.normal(k3, (n,), jnp.float32),
                running_var=jax.random.uniform(k4, (n,), jnp.float32, 0.5, 1.5))


def fold_conv_bn(conv_params):
    """Fold FrozenBatchNorm2d (eps=1e-5) into the transposed (Cout, Cin) 1x1
    conv weight (conv has bias=False in BasicConv)."""
    eps = 1e-5
    bn = conv_params["bn"]
    scale = bn["weight"] * jax.lax.rsqrt(bn["running_var"] + eps)   # (Cout,)
    bias = bn["bias"] - bn["running_mean"] * scale                  # (Cout,)
    w_fused = (conv_params["w"] * scale[:, None]).astype(jnp.bfloat16)  # (Cout, Cin)
    return w_fused, bias[:, None].astype(jnp.float32)                   # (Cout, 1)


def interp_mask_nearest(mask, size):
    # F.interpolate(m[None].float(), size=size) (default mode='nearest') -> bool
    N, Hin, Win = mask.shape
    Hout, Wout = size
    hi = (jnp.arange(Hout) * Hin // Hout).astype(jnp.int32)
    wi = (jnp.arange(Wout) * Win // Wout).astype(jnp.int32)
    return mask[:, hi][:, :, wi]


def backbone_base_forward(params, feat1, feat2, mask, phi=0):
    """BackboneBase.forward with feat1/feat2 already produced by self.body."""
    # (phi in 1..4 attention blocks skipped; see TODO at top of file)
    N, C2, H2, W2 = feat2.shape
    S = H2 * W2

    w1, b1 = fold_conv_bn(params["conv_for_P5"])     # (256,512) bf16, (256,1) f32
    w2, b2 = fold_conv_bn(params["upsample_conv"])   # (128,256) bf16, (128,1) f32

    # conv_for_P5 (512->256) + upsample's BasicConv (256->128), fused in one
    # pallas_call directly on the NCHW layout (no transposes in or out).
    x2 = feat2.reshape(N, C2, S)                     # free view
    y2 = p5_head(x2, w1, b1, w2, b2)                 # (N, 128, S) f32, NCHW
    Cmid = y2.shape[1]
    p5 = y2.reshape(N, Cmid, H2, W2)

    # nn.Upsample(scale_factor=2, 'nearest'): one broadcast/reshape pass in NCHW.
    p5u = jnp.broadcast_to(
        p5[:, :, :, None, :, None],
        (N, Cmid, H2, 2, W2, 2)).reshape(N, Cmid, 2 * H2, 2 * W2)

    # torch.cat([P5_Upsample, feat1], axis=1) -- feat1 never relayouted.
    P4 = jnp.concatenate([p5u, feat1], axis=1)       # (N, 384, 2*H2, 2*W2)
    out_mask = interp_mask_nearest(mask, P4.shape[-2:])
    return {"out": (P4, out_mask)}


# --------------------------------------------------------------------------
# Pure-JAX f32 reference (mirrors the PyTorch module) for a tolerance check.
# --------------------------------------------------------------------------
def reference_P4(params, feat1, feat2):
    def conv_bn_lrelu(x, p):
        eps = 1e-5
        bn = p["bn"]
        scale = bn["weight"] * jax.lax.rsqrt(bn["running_var"] + eps)
        bias = bn["bias"] - bn["running_mean"] * scale
        y = jnp.einsum("oc,nchw->nohw", p["w"], x)
        y = y * scale[None, :, None, None] + bias[None, :, None, None]
        return jnp.where(y >= 0, y, 0.1 * y)

    P5 = conv_bn_lrelu(feat2, params["conv_for_P5"])
    U = conv_bn_lrelu(P5, params["upsample_conv"])
    N, C, H, W = U.shape
    Uu = jnp.broadcast_to(U[:, :, :, None, :, None],
                          (N, C, H, 2, W, 2)).reshape(N, C, 2 * H, 2 * W)
    return jnp.concatenate([Uu, feat1], axis=1)


# --------------------------------------------------------------------------
if __name__ == "__main__":
    key = jax.random.PRNGKey(0)
    k1, k2, k3, k4, k5, k6, k7 = jax.random.split(key, 7)

    N = 2
    H1, W1 = 16, 16          # feat1 spatial
    H2, W2 = 8, 8            # feat2 spatial (half of feat1)
    HM, WM = 32, 32          # original image-level mask resolution

    feat1 = jax.random.normal(k1, (N, 256, H1, W1), jnp.float32)
    feat2 = jax.random.normal(k2, (N, 512, H2, W2), jnp.float32)
    mask = jax.random.uniform(k3, (N, HM, WM)) > 0.5

    # 1x1 conv weights stored as (Cout, Cin) matrices (== PyTorch's
    # (Cout, Cin, 1, 1) weight squeezed); FrozenBN with non-trivial stats.
    params = {
        "conv_for_P5": {
            "w": 0.05 * jax.random.normal(k4, (256, 512), jnp.float32),
            "bn": make_frozen_bn(256, k6),
        },
        "upsample_conv": {
            "w": 0.05 * jax.random.normal(k5, (128, 256), jnp.float32),
            "bn": make_frozen_bn(128, k7),
        },
    }

    fwd = jax.jit(lambda p, f1, f2, m: backbone_base_forward(p, f1, f2, m, phi=0))
    out = fwd(params, feat1, feat2, mask)
    P4, out_mask = out["out"]
    jax.block_until_ready(P4)
    jax.block_until_ready(out_mask)

    assert P4.shape == (N, 384, H1, W1), P4.shape
    assert P4.dtype == jnp.float32
    assert out_mask.shape == (N, H1, W1), out_mask.shape
    assert out_mask.dtype == jnp.bool_

    # Correctness vs. the f32 reference (bf16 MXU operands -> generous tol).
    P4_ref = jax.jit(reference_P4)(params, feat1, feat2)
    jax.block_until_ready(P4_ref)
    err = float(jnp.max(jnp.abs(P4 - P4_ref)))
    assert err < 0.1, f"max abs err vs f32 reference: {err}"

    print("KERNEL_OK")
</pallas_src>

<mosaic_0001>
module attributes {stable_mosaic.version = 11 : i64} {
  func.func @_p5_head_kernel(%arg0: i32, %arg1: i32, %arg2: memref<1x512x64xf32, #tpu.memory_space<vmem>>, %arg3: memref<256x512xbf16, #tpu.memory_space<vmem>>, %arg4: memref<256x1xf32, #tpu.memory_space<vmem>>, %arg5: memref<128x256xbf16, #tpu.memory_space<vmem>>, %arg6: memref<128x1xf32, #tpu.memory_space<vmem>>, %arg7: memref<1x128x64xf32, #tpu.memory_space<vmem>>) attributes {dimension_semantics = [#tpu.dimension_semantics<parallel>, #tpu.dimension_semantics<parallel>], iteration_bounds = array<i64: 2, 1>, scalar_prefetch = 0 : i64, scratch_operands = 0 : i64, tpu.core_type = #tpu.core_type<tc>, window_params = [{transform_indices = @transform_0, window_bounds = array<i64: 1, 512, 64>}, {pipeline_mode = #tpu.pipeline_mode<synchronous>, transform_indices = @transform_1, window_bounds = array<i64: 256, 512>}, {pipeline_mode = #tpu.pipeline_mode<synchronous>, transform_indices = @transform_2, window_bounds = array<i64: 256, 1>}, {pipeline_mode = #tpu.pipeline_mode<synchronous>, transform_indices = @transform_3, window_bounds = array<i64: 128, 256>}, {pipeline_mode = #tpu.pipeline_mode<synchronous>, transform_indices = @transform_4, window_bounds = array<i64: 128, 1>}, {transform_indices = @transform_5, window_bounds = array<i64: 1, 128, 64>}]} {
    %c0 = arith.constant 0 : index
    %c0_0 = arith.constant 0 : index
    %c0_1 = arith.constant 0 : index
    %0 = vector.load %arg2[%c0, %c0_0, %c0_1] : memref<1x512x64xf32, #tpu.memory_space<vmem>>, vector<1x512x64xf32>
    %1 = vector.shape_cast %0 : vector<1x512x64xf32> to vector<512x64xf32>
    %2 = arith.truncf %1 : vector<512x64xf32> to vector<512x64xbf16>
    %c0_2 = arith.constant 0 : index
    %c0_3 = arith.constant 0 : index
    %3 = vector.load %arg3[%c0_2, %c0_3] : memref<256x512xbf16, #tpu.memory_space<vmem>>, vector<256x512xbf16>
    %cst = arith.constant dense<0.000000e+00> : vector<256x64xf32>
    %4 = tpu.matmul %3, %2, %cst {dimension_numbers = #tpu.dot_dimension_numbers<[1], [0], [0], [1], [0, 0, 1, 1], [], []>} : vector<256x512xbf16>, vector<512x64xbf16>, vector<256x64xf32> -> vector<256x64xf32>
    %c0_4 = arith.constant 0 : index
    %c0_5 = arith.constant 0 : index
    %5 = vector.load %arg4[%c0_4, %c0_5] : memref<256x1xf32, #tpu.memory_space<vmem>>, vector<256x1xf32>
    %6 = vector.broadcast %5 : vector<256x1xf32> to vector<256x64xf32>
    %7 = arith.addf %4, %6 : vector<256x64xf32>
    %cst_6 = arith.constant 1.000000e-01 : f32
    %8 = vector.broadcast %cst_6 : f32 to vector<256x64xf32>
    %9 = arith.mulf %8, %7 : vector<256x64xf32>
    %10 = arith.maximumf %7, %9 : vector<256x64xf32>
    %c0_7 = arith.constant 0 : index
    %c0_8 = arith.constant 0 : index
    %11 = vector.load %arg5[%c0_7, %c0_8] : memref<128x256xbf16, #tpu.memory_space<vmem>>, vector<128x256xbf16>
    %12 = arith.truncf %10 : vector<256x64xf32> to vector<256x64xbf16>
    %cst_9 = arith.constant dense<0.000000e+00> : vector<128x64xf32>
    %13 = tpu.matmul %11, %12, %cst_9 {dimension_numbers = #tpu.dot_dimension_numbers<[1], [0], [0], [1], [0, 0, 1, 1], [], []>} : vector<128x256xbf16>, vector<256x64xbf16>, vector<128x64xf32> -> vector<128x64xf32>
    %c0_10 = arith.constant 0 : index
    %c0_11 = arith.constant 0 : index
    %14 = vector.load %arg6[%c0_10, %c0_11] : memref<128x1xf32, #tpu.memory_space<vmem>>, vector<128x1xf32>
    %15 = vector.broadcast %14 : vector<128x1xf32> to vector<128x64xf32>
    %16 = arith.addf %13, %15 : vector<128x64xf32>
    %cst_12 = arith.constant 1.000000e-01 : f32
    %17 = vector.broadcast %cst_12 : f32 to vector<128x64xf32>
    %18 = arith.mulf %17, %16 : vector<128x64xf32>
    %19 = arith.maximumf %16, %18 : vector<128x64xf32>
    %c0_13 = arith.constant 0 : index
    %c0_14 = arith.constant 0 : index
    %c0_15 = arith.constant 0 : index
    %20 = vector.load %arg7[%c0_13, %c0_14, %c0_15] : memref<1x128x64xf32, #tpu.memory_space<vmem>>, vector<1x128x64xf32>
    %21 = vector.shape_cast %20 : vector<1x128x64xf32> to vector<128x64xf32>
    %22 = vector.shape_cast %19 : vector<128x64xf32> to vector<1x128x64xf32>
    tpu.vector_store %arg7[%c0_13, %c0_14, %c0_15], %22 {strides = array<i32>} : memref<1x128x64xf32, #tpu.memory_space<vmem>>, vector<1x128x64xf32>,
    return
  }
  func.func @transform_0(%arg0: i32, %arg1: i32) -> (i32, i32, i32) {
    %c0_i32 = arith.constant 0 : i32
    %c0_i32_0 = arith.constant 0 : i32
    return %arg0, %c0_i32, %arg1 : i32, i32, i32
  }
  func.func @transform_1(%arg0: i32, %arg1: i32) -> (i32, i32) {
    %c0_i32 = arith.constant 0 : i32
    %c0_i32_0 = arith.constant 0 : i32
    %c0_i32_1 = arith.constant 0 : i32
    return %c0_i32, %c0_i32_0 : i32, i32
  }
  func.func @transform_2(%arg0: i32, %arg1: i32) -> (i32, i32) {
    %c0_i32 = arith.constant 0 : i32
    %c0_i32_0 = arith.constant 0 : i32
    %c0_i32_1 = arith.constant 0 : i32
    return %c0_i32, %c0_i32_0 : i32, i32
  }
  func.func @transform_3(%arg0: i32, %arg1: i32) -> (i32, i32) {
    %c0_i32 = arith.constant 0 : i32
    %c0_i32_0 = arith.constant 0 : i32
    %c0_i32_1 = arith.constant 0 : i32
    return %c0_i32, %c0_i32_0 : i32, i32
  }
  func.func @transform_4(%arg0: i32, %arg1: i32) -> (i32, i32) {
    %c0_i32 = arith.constant 0 : i32
    %c0_i32_0 = arith.constant 0 : i32
    %c0_i32_1 = arith.constant 0 : i32
    return %c0_i32, %c0_i32_0 : i32, i32
  }
  func.func @transform_5(%arg0: i32, %arg1: i32) -> (i32, i32, i32) {
    %c0_i32 = arith.constant 0 : i32
    %c0_i32_0 = arith.constant 0 : i32
    return %arg0, %c0_i32, %arg1 : i32, i32, i32
  }
}

</mosaic_0001>

<llo_original>
// kernel: _lambda_.1
$region0: #{_lambda_.1}
  #allocation0 [shape = 'u32[]', space=smem, size = 0x4, offset = 0x4, fixed_abs, tag = 'smem constant byte address 0x4 - core index']
  #allocation1 [shape = 'u32[144,128]{1,0:T(1,128)}', space=vmem, size = 0x12000, scoped, tag = 'internal scratch']
  %s0 = inlined_call_operand.vmem [shape: f32[2,512,64], index: 0, kind: input, shape index: {}]
  %s1 = inlined_call_operand.vmem [shape: bf16[256,512], index: 1, kind: input, shape index: {}]
  %s2 = inlined_call_operand.vmem [shape: f32[256,1], index: 2, kind: input, shape index: {}]
  %s3 = inlined_call_operand.vmem [shape: bf16[128,256], index: 3, kind: input, shape index: {}]
  %s4 = inlined_call_operand.vmem [shape: f32[128,1], index: 4, kind: input, shape index: {}]
  %s5 = inlined_call_operand.vmem [shape: f32[2,128,64], index: 5, kind: output, shape index: {}]
  %s6 = sld [smem:[#allocation0]]
  $region53: #{_lambda_.1} parent=0
    _
  %s8 = ssub.s32 1, %s6
  %s9 = scalar_select 0, %s8, %s6
  loop: start=0, step=1, limit=4
  $region2: #{_lambda_.1} parent=0 // loop_pre_header
    _
  $region3: #{_lambda_.1} parent=0 // loop_header
    %s11 = sphi 0, %s15
    %p12 = scmp.ge.s32.totalorder %s11, 4
    %s18 = sphi 0, %s30
    %s19 = sphi 0, %s26
    %s20 = sphi 0, %s18
    %s21 = sphi 0, %s19
    %s22 = sphi 0, %s20
    %s23 = sphi 0, %s21
    %s35 = sphi 0, %s37
    %s38 = sphi 0, %s35
    %s39 = sphi 0, %s38
    %s55 = sphi 0, %s39
    %s59 = sphi 0, %s59
    %s61 = sphi 0, %s59
    %s62 = sphi 0, %s61
    %s76 = sphi 0, %s62
    %s80 = sphi 0, %s80
    %s82 = sphi 0, %s80
    %s83 = sphi 0, %s82
    %s97 = sphi 0, %s83
    %s101 = sphi 0, %s101
    %s103 = sphi 0, %s101
    %s104 = sphi 0, %s103
    %s118 = sphi 0, %s104
    %s122 = sphi 0, %s122
    %s124 = sphi 0, %s122
    %s125 = sphi 0, %s124
    %s139 = sphi 0, %s125
    %s147 = sphi 0, %s149
    %s150 = sphi 0, %s147
    %s151 = sphi 0, %s150
    %s167 = sphi 0, %s151
  $region4: #{_lambda_.1} parent=0 // loop_header_branch
    %14 = sbr.rel (%p12) target = $region8
  $region5: #{_lambda_.1} parent=0 // loop_body
    %s16 = ssub.s32 %s11, 1
    %s17 = ssub.s32 %s11, 2
    %s24 = sadd.s32 1, %s19
    %p25 = scmp.ge.s32.totalorder %s24, 1
    %s26 = scalar_select %p25, 0, %s24
    %s27 = sadd.s32 1, %s18
    %s28 = scalar_select %p25, %s27, %s18
    %p29 = scmp.ge.s32.totalorder %s28, 2
    %s30 = scalar_select %p29, 0, %s28
    %s31 = ssub.s32 %s18, %s30
    %s32 = ssub.s32 %s19, %s26
    %s33 = sor.u32 %s31, %s32
    %p34 = scmp.eq.s32.totalorder %s33, 0
    %s36 = sadd.s32 %s35, 1
    %s37 = scalar_select %p34, %s35, %s36
    %p40 = pneg %p34
    %p41 = scmp.eq.s32.totalorder %s11, 1
    %p42 = por %p40, %p41
    %p43 = scmp.ne.s32.totalorder %s35, %s38
    %p44 = scmp.eq.s32.totalorder %s11, 0
    %p45 = por %p43, %p44
    %p46 = scmp.ne.s32.totalorder %s35, %s38
    %p47 = scmp.eq.s32.totalorder %s16, 1
    %p48 = por %p46, %p47
    %p49 = scmp.ne.s32.totalorder %s38, %s39
    %p50 = scmp.eq.s32.totalorder %s16, 0
    %p51 = por %p49, %p50
    %p52 = scmp.ne.s32.totalorder %s38, %s39
    %p53 = scmp.eq.s32.totalorder %s17, 1
    %p54 = por %p52, %p53
    %p56 = scmp.ne.s32.totalorder %s39, %s55
    %p57 = scmp.eq.s32.totalorder %s17, 0
    %p58 = por %p56, %p57
    %s60 = sadd.s32 %s59, 1
    %p63 = scmp.eq.s32.totalorder %s11, 1
    %p64 = scmp.ne.s32.totalorder %s59, %s61
    %p65 = scmp.eq.s32.totalorder %s11, 0
    %p66 = por %p64, %p65
    %p67 = scmp.ne.s32.totalorder %s59, %s61
    %p68 = scmp.eq.s32.totalorder %s16, 1
    %p69 = por %p67, %p68
    %p70 = scmp.ne.s32.totalorder %s61, %s62
    %p71 = scmp.eq.s32.totalorder %s16, 0
    %p72 = por %p70, %p71
    %p73 = scmp.ne.s32.totalorder %s61, %s62
    %p74 = scmp.eq.s32.totalorder %s17, 1
    %p75 = por %p73, %p74
    %p77 = scmp.ne.s32.totalorder %s62, %s76
    %p78 = scmp.eq.s32.totalorder %s17, 0
    %p79 = por %p77, %p78
    %s81 = sadd.s32 %s80, 1
    %p84 = scmp.eq.s32.totalorder %s11, 1
    %p85 = scmp.ne.s32.totalorder %s80, %s82
    %p86 = scmp.eq.s32.totalorder %s11, 0
    %p87 = por %p85, %p86
    %p88 = scmp.ne.s32.totalorder %s80, %s82
    %p89 = scmp.eq.s32.totalorder %s16, 1
    %p90 = por %p88, %p89
    %p91 = scmp.ne.s32.totalorder %s82, %s83
    %p92 = scmp.eq.s32.totalorder %s16, 0
    %p93 = por %p91, %p92
    %p94 = scmp.ne.s32.totalorder %s82, %s83
    %p95 = scmp.eq.s32.totalorder %s17, 1
    %p96 = por %p94, %p95
    %p98 = scmp.ne.s32.totalorder %s83, %s97
    %p99 = scmp.eq.s32.totalorder %s17, 0
    %p100 = por %p98, %p99
    %s102 = sadd.s32 %s101, 1
    %p105 = scmp.eq.s32.totalorder %s11, 1
    %p106 = scmp.ne.s32.totalorder %s101, %s103
    %p107 = scmp.eq.s32.totalorder %s11, 0
    %p108 = por %p106, %p107
    %p109 = scmp.ne.s32.totalorder %s101, %s103
    %p110 = scmp.eq.s32.totalorder %s16, 1
    %p111 = por %p109, %p110
    %p112 = scmp.ne.s32.totalorder %s103, %s104
    %p113 = scmp.eq.s32.totalorder %s16, 0
    %p114 = por %p112, %p113
    %p115 = scmp.ne.s32.totalorder %s103, %s104
    %p116 = scmp.eq.s32.totalorder %s17, 1
    %p117 = por %p115, %p116
    %p119 = scmp.ne.s32.totalorder %s104, %s118
    %p120 = scmp.eq.s32.totalorder %s17, 0
    %p121 = por %p119, %p120
    %s123 = sadd.s32 %s122, 1
    %p126 = scmp.eq.s32.totalorder %s11, 1
    %p127 = scmp.ne.s32.totalorder %s122, %s124
    %p128 = scmp.eq.s32.totalorder %s11, 0
    %p129 = por %p127, %p128
    %p130 = scmp.ne.s32.totalorder %s122, %s124
    %p131 = scmp.eq.s32.totalorder %s16, 1
    %p132 = por %p130, %p131
    %p133 = scmp.ne.s32.totalorder %s124, %s125
    %p134 = scmp.eq.s32.totalorder %s16, 0
    %p135 = por %p133, %p134
    %p136 = scmp.ne.s32.totalorder %s124, %s125
    %p137 = scmp.eq.s32.totalorder %s17, 1
    %p138 = por %p136, %p137
    %p140 = scmp.ne.s32.totalorder %s125, %s139
    %p141 = scmp.eq.s32.totalorder %s17, 0
    %p142 = por %p140, %p141
    %s143 = ssub.s32 %s18, %s30
    %s144 = ssub.s32 %s19, %s26
    %s145 = sor.u32 %s143, %s144
    %p146 = scmp.eq.s32.totalorder %s145, 0
    %s148 = sadd.s32 %s147, 1
    %s149 = scalar_select %p146, %s147, %s148
    %p152 = pneg %p146
    %p153 = scmp.eq.s32.totalorder %s11, 1
    %p154 = por %p152, %p153
    %p155 = scmp.ne.s32.totalorder %s147, %s150
    %p156 = scmp.eq.s32.totalorder %s11, 0
    %p157 = por %p155, %p156
    %p158 = scmp.ne.s32.totalorder %s147, %s150
    %p159 = scmp.eq.s32.totalorder %s16, 1
    %p160 = por %p158, %p159
    %p161 = scmp.ne.s32.totalorder %s150, %s151
    %p162 = scmp.eq.s32.totalorder %s16, 0
    %p163 = por %p161, %p162
    %p164 = scmp.ne.s32.totalorder %s150, %s151
    %p165 = scmp.eq.s32.totalorder %s17, 1
    %p166 = por %p164, %p165
    %p168 = scmp.ne.s32.totalorder %s151, %s167
    %p169 = scmp.eq.s32.totalorder %s17, 0
    %p170 = por %p168, %p169
    %p171 = scmp.le.s32.totalorder 1, %s11
    %p172 = scmp.lt.s32.totalorder %s11, 3
    %p173 = pnand %p171, %p172
    %p174 = pneg %p173
    // Predicated region
    $region9: #{_lambda_.1} parent=5 // pred_check
      _
    $region10: #{_lambda_.1} parent=5 // pred_check_branch
      %176 = sbr.rel (%p173) target = $region12
    $region11: #{_lambda_.1} parent=5 // pred_region
      %s177 = ssub.s32 %s11, 1
      // Predicated region
      $region13: #{_lambda_.1} parent=11 // pred_check
        %p178 = pneg %p72
      $region14: #{_lambda_.1} parent=11 // pred_check_branch
        %180 = sbr.rel (%p178) target = $region16
      $region15: #{_lambda_.1} parent=11 // pred_region
        _
      $region16: #{_lambda_.1} parent=11 // pred_fallthru
        _
      // Predicated region
      $region17: #{_lambda_.1} parent=11 // pred_check
        %p181 = pneg %p93
      $region18: #{_lambda_.1} parent=11 // pred_check_branch
        %183 = sbr.rel (%p181) target = $region20
      $region19: #{_lambda_.1} parent=11 // pred_region
        _
      $region20: #{_lambda_.1} parent=11 // pred_fallthru
        _
      // Predicated region
      $region21: #{_lambda_.1} parent=11 // pred_check
        %p184 = pneg %p114
      $region22: #{_lambda_.1} parent=11 // pred_check_branch
        %186 = sbr.rel (%p184) target = $region24
      $region23: #{_lambda_.1} parent=11 // pred_region
        _
      $region24: #{_lambda_.1} parent=11 // pred_fallthru
        _
      // Predicated region
      $region25: #{_lambda_.1} parent=11 // pred_check
        %p187 = pneg %p135
      $region26: #{_lambda_.1} parent=11 // pred_check_branch
        %189 = sbr.rel (%p187) target = $region28
      $region27: #{_lambda_.1} parent=11 // pred_region
        _
      $region28: #{_lambda_.1} parent=11 // pred_fallthru
        _
    $region12: #{_lambda_.1} parent=5 // pred_fallthru
      _
    %p190 = scmp.lt.s32.totalorder %s11, 2
    // Predicated region
    $region29: #{_lambda_.1} parent=5 // pred_check
      %p191 = pneg %p190
    $region30: #{_lambda_.1} parent=5 // pred_check_branch
      %193 = sbr.rel (%p191) target = $region32
    $region31: #{_lambda_.1} parent=5 // pred_region
      // Predicated region
      $region33: #{_lambda_.1} parent=31 // pred_check
        %p194 = pneg %p45
      $region34: #{_lambda_.1} parent=31 // pred_check_branch
        %196 = sbr.rel (%p194) target = $region36
      $region35: #{_lambda_.1} parent=31 // pred_region
        %p197 = scmp.lt.s32.totalorder %s18, 1
        %s198 = scalar_select %p197, %s18, 1
        %p199 = scmp.lt.s32.totalorder %s19, 0
        %s200 = scalar_select %p199, %s19, 0
        %s201 = smul.addr %s198, 64
        %s202 = sadd.s32 %s200, %s201
        %s203 = smul.addr %s202, 8
        %s204 = scalar_lea.vmem %s0, %s203
      $region36: #{_lambda_.1} parent=31 // pred_fallthru
        _
    $region32: #{_lambda_.1} parent=5 // pred_fallthru
      _
    %p205 = scmp.le.s32.totalorder 1, %s11
    %p206 = scmp.lt.s32.totalorder %s11, 3
    %p207 = pnand %p205, %p206
    %p208 = pneg %p207
    // Predicated region
    $region37: #{_lambda_.1} parent=5 // pred_check
      _
    $region38: #{_lambda_.1} parent=5 // pred_check_branch
      %210 = sbr.rel (%p207) target = $region40
    $region39: #{_lambda_.1} parent=5 // pred_region
      %s211 = ssub.s32 %s11, 1
      %p212 = scmp.lt.s32.totalorder %s20, 1
      %s213 = scalar_select %p212, %s20, 1
      %p214 = scmp.lt.s32.totalorder %s21, 0
      %s215 = scalar_select %p214, %s21, 0
      %s216 = smul.addr %s213, 64
      %s217 = sadd.s32 %s215, %s216
      %s218 = smul.addr %s217, 8
      %s219 = scalar_lea.vmem %s0, %s218
      %p220 = pneg %p51
      %p221 = pneg %p48
      %p222 = pneg %p72
      %p223 = pneg %p69
      %p224 = pneg %p93
      %p225 = pneg %p90
      %p226 = pneg %p114
      %p227 = pneg %p111
      %p228 = pneg %p135
      %p229 = pneg %p132
      %p230 = pneg %p163
      %p231 = pneg %p160
      %p232 = scmp.lt.s32.totalorder %s20, 1
      %s233 = scalar_select %p232, %s20, 1
      %p234 = scmp.lt.s32.totalorder %s21, 0
      %s235 = scalar_select %p234, %s21, 0
      %s236 = smul.addr %s233, 16
      %s237 = sadd.s32 %s235, %s236
      %s238 = smul.addr %s237, 8
      %s239 = scalar_lea.vmem %s5, %s238
      %p240 = scmp.lt.s32.totalorder %s20, 1
      %s241 = scalar_select %p240, %s20, 1
      %p242 = scmp.lt.s32.totalorder %s21, 0
      %s243 = scalar_select %p242, %s21, 0
      %s244 = smul.addr %s241, 64
      %s245 = sadd.s32 %s243, %s244
      %s246 = smul.addr %s245, 8
      %s247 = scalar_lea.vmem %s0, %s246
      %p248 = scmp.lt.s32.totalorder %s20, 1
      %s249 = scalar_select %p248, %s20, 1
      %p250 = scmp.lt.s32.totalorder %s21, 0
      %s251 = scalar_select %p250, %s21, 0
      %s252 = smul.addr %s249, 16
      %s253 = sadd.s32 %s251, %s252
      %s254 = smul.addr %s253, 8
      %s255 = scalar_lea.vmem %s5, %s254
      %v257 = vld [vmem:[%s247] sm:$0xff]
      %v258 = vld [vmem:[%s247 + $0x8] sm:$0xff]
      %v259 = vld [vmem:[%s247 + $0x10] sm:$0xff]
      %v260 = vld [vmem:[%s247 + $0x18] sm:$0xff]
      %v261 = vld [vmem:[%s247 + $0x20] sm:$0xff]
      %v262 = vld [vmem:[%s247 + $0x28] sm:$0xff]
      %v263 = vld [vmem:[%s247 + $0x30] sm:$0xff]
      %v264 = vld [vmem:[%s247 + $0x38] sm:$0xff]
      %v265 = vld [vmem:[%s247 + $0x40] sm:$0xff]
      %v266 = vld [vmem:[%s247 + $0x48] sm:$0xff]
      %v267 = vld [vmem:[%s247 + $0x50] sm:$0xff]
      %v268 = vld [vmem:[%s247 + $0x58] sm:$0xff]
      %v269 = vld [vmem:[%s247 + $0x60] sm:$0xff]
      %v270 = vld [vmem:[%s247 + $0x68] sm:$0xff]
      %v271 = vld [vmem:[%s247 + $0x70] sm:$0xff]
      %v272 = vld [vmem:[%s247 + $0x78] sm:$0xff]
      %v273 = vld [vmem:[%s247 + $0x80] sm:$0xff]
      %v274 = vld [vmem:[%s247 + $0x88] sm:$0xff]
      %v275 = vld [vmem:[%s247 + $0x90] sm:$0xff]
      %v276 = vld [vmem:[%s247 + $0x98] sm:$0xff]
      %v277 = vld [vmem:[%s247 + $0xa0] sm:$0xff]
      %v278 = vld [vmem:[%s247 + $0xa8] sm:$0xff]
      %v279 = vld [vmem:[%s247 + $0xb0] sm:$0xff]
      %v280 = vld [vmem:[%s247 + $0xb8] sm:$0xff]
      %v281 = vld [vmem:[%s247 + $0xc0] sm:$0xff]
      %v282 = vld [vmem:[%s247 + $0xc8] sm:$0xff]
      %v283 = vld [vmem:[%s247 + $0xd0] sm:$0xff]
      %v284 = vld [vmem:[%s247 + $0xd8] sm:$0xff]
      %v285 = vld [vmem:[%s247 + $0xe0] sm:$0xff]
      %v286 = vld [vmem:[%s247 + $0xe8] sm:$0xff]
      %v287 = vld [vmem:[%s247 + $0xf0] sm:$0xff]
      %v288 = vld [vmem:[%s247 + $0xf8] sm:$0xff]
      %v289 = vld [vmem:[%s247 + $0x100] sm:$0xff]
      %v290 = vld [vmem:[%s247 + $0x108] sm:$0xff]
      %v291 = vld [vmem:[%s247 + $0x110] sm:$0xff]
      %v292 = vld [vmem:[%s247 + $0x118] sm:$0xff]
      %v293 = vld [vmem:[%s247 + $0x120] sm:$0xff]
      %v294 = vld [vmem:[%s247 + $0x128] sm:$0xff]
      %v295 = vld [vmem:[%s247 + $0x130] sm:$0xff]
      %v296 = vld [vmem:[%s247 + $0x138] sm:$0xff]
      %v297 = vld [vmem:[%s247 + $0x140] sm:$0xff]
      %v298 = vld [vmem:[%s247 + $0x148] sm:$0xff]
      %v299 = vld [vmem:[%s247 + $0x150] sm:$0xff]
      %v300 = vld [vmem:[%s247 + $0x158] sm:$0xff]
      %v301 = vld [vmem:[%s247 + $0x160] sm:$0xff]
      %v302 = vld [vmem:[%s247 + $0x168] sm:$0xff]
      %v303 = vld [vmem:[%s247 + $0x170] sm:$0xff]
      %v304 = vld [vmem:[%s247 + $0x178] sm:$0xff]
      %v305 = vld [vmem:[%s247 + $0x180] sm:$0xff]
      %v306 = vld [vmem:[%s247 + $0x188] sm:$0xff]
      %v307 = vld [vmem:[%s247 + $0x190] sm:$0xff]
      %v308 = vld [vmem:[%s247 + $0x198] sm:$0xff]
      %v309 = vld [vmem:[%s247 + $0x1a0] sm:$0xff]
      %v310 = vld [vmem:[%s247 + $0x1a8] sm:$0xff]
      %v311 = vld [vmem:[%s247 + $0x1b0] sm:$0xff]
      %v312 = vld [vmem:[%s247 + $0x1b8] sm:$0xff]
      %v313 = vld [vmem:[%s247 + $0x1c0] sm:$0xff]
      %v314 = vld [vmem:[%s247 + $0x1c8] sm:$0xff]
      %v315 = vld [vmem:[%s247 + $0x1d0] sm:$0xff]
      %v316 = vld [vmem:[%s247 + $0x1d8] sm:$0xff]
      %v317 = vld [vmem:[%s247 + $0x1e0] sm:$0xff]
      %v318 = vld [vmem:[%s247 + $0x1e8] sm:$0xff]
      %v319 = vld [vmem:[%s247 + $0x1f0] sm:$0xff]
      %v320 = vld [vmem:[%s247 + $0x1f8] sm:$0xff]
      %v321 = vpack.c.bf16 %v258, %v257
      %v322 = vpack.c.bf16 %v260, %v259
      %v323 = vpack.c.bf16 %v262, %v261
      %v324 = vpack.c.bf16 %v264, %v263
      %v325 = vpack.c.bf16 %v266, %v265
      %v326 = vpack.c.bf16 %v268, %v267
      %v327 = vpack.c.bf16 %v270, %v269
      %v328 = vpack.c.bf16 %v272, %v271
      %v329 = vpack.c.bf16 %v274, %v273
      %v330 = vpack.c.bf16 %v276, %v275
      %v331 = vpack.c.bf16 %v278, %v277
      %v332 = vpack.c.bf16 %v280, %v279
      %v333 = vpack.c.bf16 %v282, %v281
      %v334 = vpack.c.bf16 %v284, %v283
      %v335 = vpack.c.bf16 %v286, %v285
      %v336 = vpack.c.bf16 %v288, %v287
      %v337 = vpack.c.bf16 %v290, %v289
      %v338 = vpack.c.bf16 %v292, %v291
      %v339 = vpack.c.bf16 %v294, %v293
      %v340 = vpack.c.bf16 %v296, %v295
      %v341 = vpack.c.bf16 %v298, %v297
      %v342 = vpack.c.bf16 %v300, %v299
      %v343 = vpack.c.bf16 %v302, %v301
      %v344 = vpack.c.bf16 %v304, %v303
      %v345 = vpack.c.bf16 %v306, %v305
      %v346 = vpack.c.bf16 %v308, %v307
      %v347 = vpack.c.bf16 %v310, %v309
      %v348 = vpack.c.bf16 %v312, %v311
      %v349 = vpack.c.bf16 %v314, %v313
      %v350 = vpack.c.bf16 %v316, %v315
      %v351 = vpack.c.bf16 %v318, %v317
      %v352 = vpack.c.bf16 %v320, %v319
      %v353 = vld [vmem:[%s1] sm:$0xff]
      %v354 = vld [vmem:[%s1 + $0x8] sm:$0xff]
      %v355 = vld [vmem:[%s1 + $0x10] sm:$0xff]
      %v356 = vld [vmem:[%s1 + $0x18] sm:$0xff]
      %v357 = vld [vmem:[%s1 + $0x20] sm:$0xff]
      %v358 = vld [vmem:[%s1 + $0x28] sm:$0xff]
      %v359 = vld [vmem:[%s1 + $0x30] sm:$0xff]
      %v360 = vld [vmem:[%s1 + $0x38] sm:$0xff]
      %v361 = vld [vmem:[%s1 + $0x40] sm:$0xff]
      %v362 = vld [vmem:[%s1 + $0x48] sm:$0xff]
      %v363 = vld [vmem:[%s1 + $0x50] sm:$0xff]
      %v364 = vld [vmem:[%s1 + $0x58] sm:$0xff]
      %v365 = vld [vmem:[%s1 + $0x60] sm:$0xff]
      %v366 = vld [vmem:[%s1 + $0x68] sm:$0xff]
      %v367 = vld [vmem:[%s1 + $0x70] sm:$0xff]
      %v368 = vld [vmem:[%s1 + $0x78] sm:$0xff]
      %v369 = vld [vmem:[%s1 + $0x80] sm:$0xff]
      %v370 = vld [vmem:[%s1 + $0x88] sm:$0xff]
      %v371 = vld [vmem:[%s1 + $0x90] sm:$0xff]
      %v372 = vld [vmem:[%s1 + $0x98] sm:$0xff]
      %v373 = vld [vmem:[%s1 + $0xa0] sm:$0xff]
      %v374 = vld [vmem:[%s1 + $0xa8] sm:$0xff]
      %v375 = vld [vmem:[%s1 + $0xb0] sm:$0xff]
      %v376 = vld [vmem:[%s1 + $0xb8] sm:$0xff]
      %v377 = vld [vmem:[%s1 + $0xc0] sm:$0xff]
      %v378 = vld [vmem:[%s1 + $0xc8] sm:$0xff]
      %v379 = vld [vmem:[%s1 + $0xd0] sm:$0xff]
      %v380 = vld [vmem:[%s1 + $0xd8] sm:$0xff]
      %v381 = vld [vmem:[%s1 + $0xe0] sm:$0xff]
      %v382 = vld [vmem:[%s1 + $0xe8] sm:$0xff]
      %v383 = vld [vmem:[%s1 + $0xf0] sm:$0xff]
      %v384 = vld [vmem:[%s1 + $0xf8] sm:$0xff]
      %v385 = vld [vmem:[%s1 + $0x100] sm:$0xff]
      %v386 = vld [vmem:[%s1 + $0x108] sm:$0xff]
      %v387 = vld [vmem:[%s1 + $0x110] sm:$0xff]
      %v388 = vld [vmem:[%s1 + $0x118] sm:$0xff]
      %v389 = vld [vmem:[%s1 + $0x120] sm:$0xff]
      %v390 = vld [vmem:[%s1 + $0x128] sm:$0xff]
      %v391 = vld [vmem:[%s1 + $0x130] sm:$0xff]
      %v392 = vld [vmem:[%s1 + $0x138] sm:$0xff]
      %v393 = vld [vmem:[%s1 + $0x140] sm:$0xff]
      %v394 = vld [vmem:[%s1 + $0x148] sm:$0xff]
      %v395 = vld [vmem:[%s1 + $0x150] sm:$0xff]
      %v396 = vld [vmem:[%s1 + $0x158] sm:$0xff]
      %v397 = vld [vmem:[%s1 + $0x160] sm:$0xff]
      %v398 = vld [vmem:[%s1 + $0x168] sm:$0xff]
      %v399 = vld [vmem:[%s1 + $0x170] sm:$0xff]
      %v400 = vld [vmem:[%s1 + $0x178] sm:$0xff]
      %v401 = vld [vmem:[%s1 + $0x180] sm:$0xff]
      %v402 = vld [vmem:[%s1 + $0x188] sm:$0xff]
      %v403 = vld [vmem:[%s1 + $0x190] sm:$0xff]
      %v404 = vld [vmem:[%s1 + $0x198] sm:$0xff]
      %v405 = vld [vmem:[%s1 + $0x1a0] sm:$0xff]
      %v406 = vld [vmem:[%s1 + $0x1a8] sm:$0xff]
      %v407 = vld [vmem:[%s1 + $0x1b0] sm:$0xff]
      %v408 = vld [vmem:[%s1 + $0x1b8] sm:$0xff]
      %v409 = vld [vmem:[%s1 + $0x1c0] sm:$0xff]
      %v410 = vld [vmem:[%s1 + $0x1c8] sm:$0xff]
      %v411 = vld [vmem:[%s1 + $0x1d0] sm:$0xff]
      %v412 = vld [vmem:[%s1 + $0x1d8] sm:$0xff]
      %v413 = vld [vmem:[%s1 + $0x1e0] sm:$0xff]
      %v414 = vld [vmem:[%s1 + $0x1e8] sm:$0xff]
      %v415 = vld [vmem:[%s1 + $0x1f0] sm:$0xff]
      %v416 = vld [vmem:[%s1 + $0x1f8] sm:$0xff]
      %v417 = vld [vmem:[%s2] sm:$0xff]
      %v418 = vld [vmem:[%s2 + $0x8] sm:$0xff]
      %v419 = vld [vmem:[%s2 + $0x10] sm:$0xff]
      %v420 = vld [vmem:[%s2 + $0x18] sm:$0xff]
      %v421 = vld [vmem:[%s2 + $0x20] sm:$0xff]
      %v422 = vld [vmem:[%s2 + $0x28] sm:$0xff]
      %v423 = vld [vmem:[%s2 + $0x30] sm:$0xff]
      %v424 = vld [vmem:[%s2 + $0x38] sm:$0xff]
      %v425 = vld [vmem:[%s2 + $0x40] sm:$0xff]
      %v426 = vld [vmem:[%s2 + $0x48] sm:$0xff]
      %v427 = vld [vmem:[%s2 + $0x50] sm:$0xff]
      %v428 = vld [vmem:[%s2 + $0x58] sm:$0xff]
      %v429 = vld [vmem:[%s2 + $0x60] sm:$0xff]
      %v430 = vld [vmem:[%s2 + $0x68] sm:$0xff]
      %v431 = vld [vmem:[%s2 + $0x70] sm:$0xff]
      %v432 = vld [vmem:[%s2 + $0x78] sm:$0xff]
      %v433 = vld [vmem:[%s2 + $0x80] sm:$0xff]
      %v434 = vld [vmem:[%s2 + $0x88] sm:$0xff]
      %v435 = vld [vmem:[%s2 + $0x90] sm:$0xff]
      %v436 = vld [vmem:[%s2 + $0x98] sm:$0xff]
      %v437 = vld [vmem:[%s2 + $0xa0] sm:$0xff]
      %v438 = vld [vmem:[%s2 + $0xa8] sm:$0xff]
      %v439 = vld [vmem:[%s2 + $0xb0] sm:$0xff]
      %v440 = vld [vmem:[%s2 + $0xb8] sm:$0xff]
      %v441 = vld [vmem:[%s2 + $0xc0] sm:$0xff]
      %v442 = vld [vmem:[%s2 + $0xc8] sm:$0xff]
      %v443 = vld [vmem:[%s2 + $0xd0] sm:$0xff]
      %v444 = vld [vmem:[%s2 + $0xd8] sm:$0xff]
      %v445 = vld [vmem:[%s2 + $0xe0] sm:$0xff]
      %v446 = vld [vmem:[%s2 + $0xe8] sm:$0xff]
      %v447 = vld [vmem:[%s2 + $0xf0] sm:$0xff]
      %v448 = vld [vmem:[%s2 + $0xf8] sm:$0xff]
      %450 = vset.pattern.permute.xlu0 0
      %451 = vperm.xlu0 %450, %v417
      %v452 = vpop.permute.xlu0 %451
      %455 = vset.pattern.permute.xlu0 0
      %456 = vperm.xlu0 %455, %v418
      %v457 = vpop.permute.xlu0 %456
      %460 = vset.pattern.permute.xlu0 0
      %461 = vperm.xlu0 %460, %v419
      %v462 = vpop.permute.xlu0 %461
      %465 = vset.pattern.permute.xlu0 0
      %466 = vperm.xlu0 %465, %v420
      %v467 = vpop.permute.xlu0 %466
      %470 = vset.pattern.permute.xlu0 0
      %471 = vperm.xlu0 %470, %v421
      %v472 = vpop.permute.xlu0 %471
      %475 = vset.pattern.permute.xlu0 0
      %476 = vperm.xlu0 %475, %v422
      %v477 = vpop.permute.xlu0 %476
      %480 = vset.pattern.permute.xlu0 0
      %481 = vperm.xlu0 %480, %v423
      %v482 = vpop.permute.xlu0 %481
      %485 = vset.pattern.permute.xlu0 0
      %486 = vperm.xlu0 %485, %v424
      %v487 = vpop.permute.xlu0 %486
      %490 = vset.pattern.permute.xlu0 0
      %491 = vperm.xlu0 %490, %v425
      %v492 = vpop.permute.xlu0 %491
      %495 = vset.pattern.permute.xlu0 0
      %496 = vperm.xlu0 %495, %v426
      %v497 = vpop.permute.xlu0 %496
      %500 = vset.pattern.permute.xlu0 0
      %501 = vperm.xlu0 %500, %v427
      %v502 = vpop.permute.xlu0 %501
      %505 = vset.pattern.permute.xlu0 0
      %506 = vperm.xlu0 %505, %v428
      %v507 = vpop.permute.xlu0 %506
      %510 = vset.pattern.permute.xlu0 0
      %511 = vperm.xlu0 %510, %v429
      %v512 = vpop.permute.xlu0 %511
      %515 = vset.pattern.permute.xlu0 0
      %516 = vperm.xlu0 %515, %v430
      %v517 = vpop.permute.xlu0 %516
      %520 = vset.pattern.permute.xlu0 0
      %521 = vperm.xlu0 %520, %v431
      %v522 = vpop.permute.xlu0 %521
      %525 = vset.pattern.permute.xlu0 0
      %526 = vperm.xlu0 %525, %v432
      %v527 = vpop.permute.xlu0 %526
      %530 = vset.pattern.permute.xlu0 0
      %531 = vperm.xlu0 %530, %v433
      %v532 = vpop.permute.xlu0 %531
      %535 = vset.pattern.permute.xlu0 0
      %536 = vperm.xlu0 %535, %v434
      %v537 = vpop.permute.xlu0 %536
      %540 = vset.pattern.permute.xlu0 0
      %541 = vperm.xlu0 %540, %v435
      %v542 = vpop.permute.xlu0 %541
      %545 = vset.pattern.permute.xlu0 0
      %546 = vperm.xlu0 %545, %v436
      %v547 = vpop.permute.xlu0 %546
      %550 = vset.pattern.permute.xlu0 0
      %551 = vperm.xlu0 %550, %v437
      %v552 = vpop.permute.xlu0 %551
      %555 = vset.pattern.permute.xlu0 0
      %556 = vperm.xlu0 %555, %v438
      %v557 = vpop.permute.xlu0 %556
      %560 = vset.pattern.permute.xlu0 0
      %561 = vperm.xlu0 %560, %v439
      %v562 = vpop.permute.xlu0 %561
      %565 = vset.pattern.permute.xlu0 0
      %566 = vperm.xlu0 %565, %v440
      %v567 = vpop.permute.xlu0 %566
      %570 = vset.pattern.permute.xlu0 0
      %571 = vperm.xlu0 %570, %v441
      %v572 = vpop.permute.xlu0 %571
      %575 = vset.pattern.permute.xlu0 0
      %576 = vperm.xlu0 %575, %v442
      %v577 = vpop.permute.xlu0 %576
      %580 = vset.pattern.permute.xlu0 0
      %581 = vperm.xlu0 %580, %v443
      %v582 = vpop.permute.xlu0 %581
      %585 = vset.pattern.permute.xlu0 0
      %586 = vperm.xlu0 %585, %v444
      %v587 = vpop.permute.xlu0 %586
      %590 = vset.pattern.permute.xlu0 0
      %591 = vperm.xlu0 %590, %v445
      %v592 = vpop.permute.xlu0 %591
      %595 = vset.pattern.permute.xlu0 0
      %596 = vperm.xlu0 %595, %v446
      %v597 = vpop.permute.xlu0 %596
      %600 = vset.pattern.permute.xlu0 0
      %601 = vperm.xlu0 %600, %v447
      %v602 = vpop.permute.xlu0 %601
      %605 = vset.pattern.permute.xlu0 0
      %606 = vperm.xlu0 %605, %v448
      %v607 = vpop.permute.xlu0 %606
      %v673 = vunpack.c.l.b16 %v353
      %v674 = vunpack.c.h.b16 %v353
      %v675 = vunpack.c.l.b16 %v354
      %v676 = vunpack.c.h.b16 %v354
      %v677 = vunpack.c.l.b16 %v355
      %v678 = vunpack.c.h.b16 %v355
      %v679 = vunpack.c.l.b16 %v356
      %v680 = vunpack.c.h.b16 %v356
      %v681 = vunpack.c.l.b16 %v357
      %v682 = vunpack.c.h.b16 %v357
      %v683 = vunpack.c.l.b16 %v358
      %v684 = vunpack.c.h.b16 %v358
      %v685 = vunpack.c.l.b16 %v359
      %v686 = vunpack.c.h.b16 %v359
      %v687 = vunpack.c.l.b16 %v360
      %v688 = vunpack.c.h.b16 %v360
      %v689 = vunpack.c.l.b16 %v361
      %v690 = vunpack.c.h.b16 %v361
      %v691 = vunpack.c.l.b16 %v362
      %v692 = vunpack.c.h.b16 %v362
      %v693 = vunpack.c.l.b16 %v363
      %v694 = vunpack.c.h.b16 %v363
      %v695 = vunpack.c.l.b16 %v364
      %v696 = vunpack.c.h.b16 %v364
      %v697 = vunpack.c.l.b16 %v365
      %v698 = vunpack.c.h.b16 %v365
      %v699 = vunpack.c.l.b16 %v366
      %v700 = vunpack.c.h.b16 %v366
      %v701 = vunpack.c.l.b16 %v367
      %v702 = vunpack.c.h.b16 %v367
      %v703 = vunpack.c.l.b16 %v368
      %v704 = vunpack.c.h.b16 %v368
      %v705 = vunpack.c.l.b16 %v369
      %v706 = vunpack.c.h.b16 %v369
      %v707 = vunpack.c.l.b16 %v370
      %v708 = vunpack.c.h.b16 %v370
      %v709 = vunpack.c.l.b16 %v371
      %v710 = vunpack.c.h.b16 %v371
      %v711 = vunpack.c.l.b16 %v372
      %v712 = vunpack.c.h.b16 %v372
      %v713 = vunpack.c.l.b16 %v373
      %v714 = vunpack.c.h.b16 %v373
      %v715 = vunpack.c.l.b16 %v374
      %v716 = vunpack.c.h.b16 %v374
      %v717 = vunpack.c.l.b16 %v375
      %v718 = vunpack.c.h.b16 %v375
      %v719 = vunpack.c.l.b16 %v376
      %v720 = vunpack.c.h.b16 %v376
      %v721 = vunpack.c.l.b16 %v377
      %v722 = vunpack.c.h.b16 %v377
      %v723 = vunpack.c.l.b16 %v378
      %v724 = vunpack.c.h.b16 %v378
      %v725 = vunpack.c.l.b16 %v379
      %v726 = vunpack.c.h.b16 %v379
      %v727 = vunpack.c.l.b16 %v380
      %v728 = vunpack.c.h.b16 %v380
      %v729 = vunpack.c.l.b16 %v381
      %v730 = vunpack.c.h.b16 %v381
      %v731 = vunpack.c.l.b16 %v382
      %v732 = vunpack.c.h.b16 %v382
      %v733 = vunpack.c.l.b16 %v383
      %v734 = vunpack.c.h.b16 %v383
      %v735 = vunpack.c.l.b16 %v384
      %v736 = vunpack.c.h.b16 %v384
      %v737 = vunpack.c.l.b16 %v385
      %v738 = vunpack.c.h.b16 %v385
      %v739 = vunpack.c.l.b16 %v386
      %v740 = vunpack.c.h.b16 %v386
      %v741 = vunpack.c.l.b16 %v387
      %v742 = vunpack.c.h.b16 %v387
      %v743 = vunpack.c.l.b16 %v388
      %v744 = vunpack.c.h.b16 %v388
      %v745 = vunpack.c.l.b16 %v389
      %v746 = vunpack.c.h.b16 %v389
      %v747 = vunpack.c.l.b16 %v390
      %v748 = vunpack.c.h.b16 %v390
      %v749 = vunpack.c.l.b16 %v391
      %v750 = vunpack.c.h.b16 %v391
      %v751 = vunpack.c.l.b16 %v392
      %v752 = vunpack.c.h.b16 %v392
      %v753 = vunpack.c.l.b16 %v393
      %v754 = vunpack.c.h.b16 %v393
      %v755 = vunpack.c.l.b16 %v394
      %v756 = vunpack.c.h.b16 %v394
      %v757 = vunpack.c.l.b16 %v395
      %v758 = vunpack.c.h.b16 %v395
      %v759 = vunpack.c.l.b16 %v396
      %v760 = vunpack.c.h.b16 %v396
      %v761 = vunpack.c.l.b16 %v397
      %v762 = vunpack.c.h.b16 %v397
      %v763 = vunpack.c.l.b16 %v398
      %v764 = vunpack.c.h.b16 %v398
      %v765 = vunpack.c.l.b16 %v399
      %v766 = vunpack.c.h.b16 %v399
      %v767 = vunpack.c.l.b16 %v400
      %v768 = vunpack.c.h.b16 %v400
      %v769 = vunpack.c.l.b16 %v401
      %v770 = vunpack.c.h.b16 %v401
      %v771 = vunpack.c.l.b16 %v402
      %v772 = vunpack.c.h.b16 %v402
      %v773 = vunpack.c.l.b16 %v403
      %v774 = vunpack.c.h.b16 %v403
      %v775 = vunpack.c.l.b16 %v404
      %v776 = vunpack.c.h.b16 %v404
      %v777 = vunpack.c.l.b16 %v405
      %v778 = vunpack.c.h.b16 %v405
      %v779 = vunpack.c.l.b16 %v406
      %v780 = vunpack.c.h.b16 %v406
      %v781 = vunpack.c.l.b16 %v407
      %v782 = vunpack.c.h.b16 %v407
      %v783 = vunpack.c.l.b16 %v408
      %v784 = vunpack.c.h.b16 %v408
      %v785 = vunpack.c.l.b16 %v409
      %v786 = vunpack.c.h.b16 %v409
      %v787 = vunpack.c.l.b16 %v410
      %v788 = vunpack.c.h.b16 %v410
      %v789 = vunpack.c.l.b16 %v411
      %v790 = vunpack.c.h.b16 %v411
      %v791 = vunpack.c.l.b16 %v412
      %v792 = vunpack.c.h.b16 %v412
      %v793 = vunpack.c.l.b16 %v413
      %v794 = vunpack.c.h.b16 %v413
      %v795 = vunpack.c.l.b16 %v414
      %v796 = vunpack.c.h.b16 %v414
      %v797 = vunpack.c.l.b16 %v415
      %v798 = vunpack.c.h.b16 %v415
      %v799 = vunpack.c.l.b16 %v416
      %v800 = vunpack.c.h.b16 %v416
      %v801 = vpack.c.b16 %v677, %v673
      %v802 = vpack.c.b16 %v678, %v674
      %v803 = vpack.c.b16 %v679, %v675
      %v804 = vpack.c.b16 %v680, %v676
      %v805 = vpack.c.b16 %v685, %v681
      %v806 = vpack.c.b16 %v686, %v682
      %v807 = vpack.c.b16 %v687, %v683
      %v808 = vpack.c.b16 %v688, %v684
      %v809 = vpack.c.b16 %v693, %v689
      %v810 = vpack.c.b16 %v694, %v690
      %v811 = vpack.c.b16 %v695, %v691
      %v812 = vpack.c.b16 %v696, %v692
      %v813 = vpack.c.b16 %v701, %v697
      %v814 = vpack.c.b16 %v702, %v698
      %v815 = vpack.c.b16 %v703, %v699
      %v816 = vpack.c.b16 %v704, %v700
      %v817 = vpack.c.b16 %v709, %v705
      %v818 = vpack.c.b16 %v710, %v706
      %v819 = vpack.c.b16 %v711, %v707
      %v820 = vpack.c.b16 %v712, %v708
      %v821 = vpack.c.b16 %v717, %v713
      %v822 = vpack.c.b16 %v718, %v714
      %v823 = vpack.c.b16 %v719, %v715
      %v824 = vpack.c.b16 %v720, %v716
      %v825 = vpack.c.b16 %v725, %v721
      %v826 = vpack.c.b16 %v726, %v722
      %v827 = vpack.c.b16 %v727, %v723
      %v828 = vpack.c.b16 %v728, %v724
      %v829 = vpack.c.b16 %v733, %v729
      %v830 = vpack.c.b16 %v734, %v730
      %v831 = vpack.c.b16 %v735, %v731
      %v832 = vpack.c.b16 %v736, %v732
      %v833 = vpack.c.b16 %v741, %v737
      %v834 = vpack.c.b16 %v742, %v738
      %v835 = vpack.c.b16 %v743, %v739
      %v836 = vpack.c.b16 %v744, %v740
      %v837 = vpack.c.b16 %v749, %v745
      %v838 = vpack.c.b16 %v750, %v746
      %v839 = vpack.c.b16 %v751, %v747
      %v840 = vpack.c.b16 %v752, %v748
      %v841 = vpack.c.b16 %v757, %v753
      %v842 = vpack.c.b16 %v758, %v754
      %v843 = vpack.c.b16 %v759, %v755
      %v844 = vpack.c.b16 %v760, %v756
      %v845 = vpack.c.b16 %v765, %v761
      %v846 = vpack.c.b16 %v766, %v762
      %v847 = vpack.c.b16 %v767, %v763
      %v848 = vpack.c.b16 %v768, %v764
      %v849 = vpack.c.b16 %v773, %v769
      %v850 = vpack.c.b16 %v774, %v770
      %v851 = vpack.c.b16 %v775, %v771
      %v852 = vpack.c.b16 %v776, %v772
      %v853 = vpack.c.b16 %v781, %v777
      %v854 = vpack.c.b16 %v782, %v778
      %v855 = vpack.c.b16 %v783, %v779
      %v856 = vpack.c.b16 %v784, %v780
      %v857 = vpack.c.b16 %v789, %v785
      %v858 = vpack.c.b16 %v790, %v786
      %v859 = vpack.c.b16 %v791, %v787
      %v860 = vpack.c.b16 %v792, %v788
      %v861 = vpack.c.b16 %v797, %v793
      %v862 = vpack.c.b16 %v798, %v794
      %v863 = vpack.c.b16 %v799, %v795
      %v864 = vpack.c.b16 %v800, %v796
      %929 = vmatprep.subr.bf16.mxu0 0
      %930 = vmatpush1.bf16.msra.mxu0 %v321
      %931 = vmatprep.subr.bf16.mxu0 0
      %932 = vmatpush1.bf16.msra.mxu0 %v322
      %933 = vmatprep.subr.bf16.mxu0 0
      %934 = vmatpush1.bf16.msra.mxu0 %v323
      %935 = vmatprep.subr.bf16.mxu0 0
      %936 = vmatpush1.bf16.msra.mxu0 %v324
      %937 = vmatprep.subr.bf16.mxu0 0
      %938 = vmatpush1.bf16.msra.mxu0 %v325
      %939 = vmatprep.subr.bf16.mxu0 0
      %940 = vmatpush1.bf16.msra.mxu0 %v326
      %941 = vmatprep.subr.bf16.mxu0 0
      %942 = vmatpush1.bf16.msra.mxu0 %v327
      %943 = vmatprep.subr.bf16.mxu0 0
      %944 = vmatpush1.bf16.msra.mxu0 %v328
      %945 = vmatprep.subr.bf16.mxu0 0
      %946 = vmatpush1.bf16.msra.mxu0 %v329
      %947 = vmatprep.subr.bf16.mxu0 0
      %948 = vmatpush1.bf16.msra.mxu0 %v330
      %949 = vmatprep.subr.bf16.mxu0 0
      %950 = vmatpush1.bf16.msra.mxu0 %v331
      %951 = vmatprep.subr.bf16.mxu0 0
      %952 = vmatpush1.bf16.msra.mxu0 %v332
      %953 = vmatprep.subr.bf16.mxu0 0
      %954 = vmatpush1.bf16.msra.mxu0 %v333
      %955 = vmatprep.subr.bf16.mxu0 0
      %956 = vmatpush1.bf16.msra.mxu0 %v334
      %957 = vmatprep.subr.bf16.mxu0 0
      %958 = vmatpush1.bf16.msra.mxu0 %v335
      %959 = vmatprep.subr.bf16.mxu0 0
      %960 = vmatpush1.bf16.msra.mxu0 %v336
      %961 = vmatprep.mubr.bf16.mxu0 %v802
      %962 = vmatmul.mubr.bf16.gmra.mrb[0].mxu0 %v801
      %v963 = vpop.f32.mrb[0].mxu0
      %v964 = vadd.f32 %v452, %v963
      %v965 = vpop.f32.mrb[0].mxu0
      %v966 = vpop.f32.mrb[0].mxu0
      %v967 = vadd.f32 %v457, %v966
      %v968 = vpop.f32.mrb[0].mxu0
      %969 = vmatprep.mubr.bf16.mxu0 %v806
      %970 = vmatmul.mubr.bf16.gmra.mrb[0].mxu0 %v805
      %v971 = vpop.f32.mrb[0].mxu0
      %v972 = vadd.f32 %v462, %v971
      %v973 = vpop.f32.mrb[0].mxu0
      %v974 = vpop.f32.mrb[0].mxu0
      %v975 = vadd.f32 %v467, %v974
      %v976 = vpop.f32.mrb[0].mxu0
      %977 = vmatprep.mubr.bf16.mxu0 %v810
      %978 = vmatmul.mubr.bf16.gmra.mrb[0].mxu0 %v809
      %v979 = vpop.f32.mrb[0].mxu0
      %v980 = vadd.f32 %v472, %v979
      %v981 = vpop.f32.mrb[0].mxu0
      %v982 = vpop.f32.mrb[0].mxu0
      %v983 = vadd.f32 %v477, %v982
      %v984 = vpop.f32.mrb[0].mxu0
      %985 = vmatprep.mubr.bf16.mxu0 %v814
      %986 = vmatmul.mubr.bf16.gmra.mrb[0].mxu0 %v813
      %v987 = vpop.f32.mrb[0].mxu0
      %v988 = vadd.f32 %v482, %v987
      %v989 = vpop.f32.mrb[0].mxu0
      %v990 = vpop.f32.mrb[0].mxu0
      %v991 = vadd.f32 %v487, %v990
      %v992 = vpop.f32.mrb[0].mxu0
      %993 = vmatprep.mubr.bf16.mxu0 %v818
      %994 = vmatmul.mubr.bf16.gmra.mrb[0].mxu0 %v817
      %v995 = vpop.f32.mrb[0].mxu0
      %v996 = vadd.f32 %v492, %v995
      %v997 = vpop.f32.mrb[0].mxu0
      %v998 = vpop.f32.mrb[0].mxu0
      %v999 = vadd.f32 %v497, %v998
      %v1000 = vpop.f32.mrb[0].mxu0
      %1001 = vmatprep.mubr.bf16.mxu0 %v822
      %1002 = vmatmul.mubr.bf16.gmra.mrb[0].mxu0 %v821
      %v1003 = vpop.f32.mrb[0].mxu0
      %v1004 = vadd.f32 %v502, %v1003
      %v1005 = vpop.f32.mrb[0].mxu0
      %v1006 = vpop.f32.mrb[0].mxu0
      %v1007 = vadd.f32 %v507, %v1006
      %v1008 = vpop.f32.mrb[0].mxu0
      %1009 = vmatprep.mubr.bf16.mxu0 %v826
      %1010 = vmatmul.mubr.bf16.gmra.mrb[0].mxu0 %v825
      %v1011 = vpop.f32.mrb[0].mxu0
      %v1012 = vadd.f32 %v512, %v1011
      %v1013 = vpop.f32.mrb[0].mxu0
      %v1014 = vpop.f32.mrb[0].mxu0
      %v1015 = vadd.f32 %v517, %v1014
      %v1016 = vpop.f32.mrb[0].mxu0
      %1017 = vmatprep.mubr.bf16.mxu0 %v830
      %1018 = vmatmul.mubr.bf16.gmra.mrb[0].mxu0 %v829
      %v1019 = vpop.f32.mrb[0].mxu0
      %v1020 = vadd.f32 %v522, %v1019
      %v1021 = vpop.f32.mrb[0].mxu0
      %v1022 = vpop.f32.mrb[0].mxu0
      %v1023 = vadd.f32 %v527, %v1022
      %v1024 = vpop.f32.mrb[0].mxu0
      %1025 = vmatprep.mubr.bf16.mxu0 %v834
      %1026 = vmatmul.mubr.bf16.gmra.mrb[0].mxu0 %v833
      %v1027 = vpop.f32.mrb[0].mxu0
      %v1028 = vadd.f32 %v532, %v1027
      %v1029 = vpop.f32.mrb[0].mxu0
      %v1030 = vpop.f32.mrb[0].mxu0
      %v1031 = vadd.f32 %v537, %v1030
      %v1032 = vpop.f32.mrb[0].mxu0
      %1033 = vmatprep.mubr.bf16.mxu0 %v838
      %1034 = vmatmul.mubr.bf16.gmra.mrb[0].mxu0 %v837
      %v1035 = vpop.f32.mrb[0].mxu0
      %v1036 = vadd.f32 %v542, %v1035
      %v1037 = vpop.f32.mrb[0].mxu0
      %v1038 = vpop.f32.mrb[0].mxu0
      %v1039 = vadd.f32 %v547, %v1038
      %v1040 = vpop.f32.mrb[0].mxu0
      %1041 = vmatprep.mubr.bf16.mxu0 %v842
      %1042 = vmatmul.mubr.bf16.gmra.mrb[0].mxu0 %v841
      %v1043 = vpop.f32.mrb[0].mxu0
      %v1044 = vadd.f32 %v552, %v1043
      %v1045 = vpop.f32.mrb[0].mxu0
      %v1046 = vpop.f32.mrb[0].mxu0
      %v1047 = vadd.f32 %v557, %v1046
      %v1048 = vpop.f32.mrb[0].mxu0
      %1049 = vmatprep.mubr.bf16.mxu0 %v846
      %1050 = vmatmul.mubr.bf16.gmra.mrb[0].mxu0 %v845
      %v1051 = vpop.f32.mrb[0].mxu0
      %v1052 = vadd.f32 %v562, %v1051
      %v1053 = vpop.f32.mrb[0].mxu0
      %v1054 = vpop.f32.mrb[0].mxu0
      %v1055 = vadd.f32 %v567, %v1054
      %v1056 = vpop.f32.mrb[0].mxu0
      %1057 = vmatprep.mubr.bf16.mxu0 %v850
      %1058 = vmatmul.mubr.bf16.gmra.mrb[0].mxu0 %v849
      %v1059 = vpop.f32.mrb[0].mxu0
      %v1060 = vadd.f32 %v572, %v1059
      %v1061 = vpop.f32.mrb[0].mxu0
      %v1062 = vpop.f32.mrb[0].mxu0
      %v1063 = vadd.f32 %v577, %v1062
      %v1064 = vpop.f32.mrb[0].mxu0
      %1065 = vmatprep.mubr.bf16.mxu0 %v854
      %1066 = vmatmul.mubr.bf16.gmra.mrb[0].mxu0 %v853
      %v1067 = vpop.f32.mrb[0].mxu0
      %v1068 = vadd.f32 %v582, %v1067
      %v1069 = vpop.f32.mrb[0].mxu0
      %v1070 = vpop.f32.mrb[0].mxu0
      %v1071 = vadd.f32 %v587, %v1070
      %v1072 = vpop.f32.mrb[0].mxu0
      %1073 = vmatprep.mubr.bf16.mxu0 %v858
      %1074 = vmatmul.mubr.bf16.gmra.mrb[0].mxu0 %v857
      %v1075 = vpop.f32.mrb[0].mxu0
      %v1076 = vadd.f32 %v592, %v1075
      %v1077 = vpop.f32.mrb[0].mxu0
      %v1078 = vpop.f32.mrb[0].mxu0
      %v1079 = vadd.f32 %v597, %v1078
      %v1080 = vpop.f32.mrb[0].mxu0
      %1081 = vmatprep.mubr.bf16.mxu0 %v862
      %1082 = vmatmul.mubr.bf16.gmra.mrb[0].mxu0 %v861
      %v1083 = vpop.f32.mrb[0].mxu0
      %v1084 = vadd.f32 %v602, %v1083
      %v1085 = vpop.f32.mrb[0].mxu0
      %v1086 = vpop.f32.mrb[0].mxu0
      %v1087 = vadd.f32 %v607, %v1086
      %v1088 = vpop.f32.mrb[0].mxu0
      %1089 = vdwg.mxu0
      %1090 = vmatprep.subr.bf16.mxu0 0
      %1091 = vmatpush1.bf16.msra.mxu0 %v337
      %1092 = vmatprep.subr.bf16.mxu0 0
      %1093 = vmatpush1.bf16.msra.mxu0 %v338
      %1094 = vmatprep.subr.bf16.mxu0 0
      %1095 = vmatpush1.bf16.msra.mxu0 %v339
      %1096 = vmatprep.subr.bf16.mxu0 0
      %1097 = vmatpush1.bf16.msra.mxu0 %v340
      %1098 = vmatprep.subr.bf16.mxu0 0
      %1099 = vmatpush1.bf16.msra.mxu0 %v341
      %1100 = vmatprep.subr.bf16.mxu0 0
      %1101 = vmatpush1.bf16.msra.mxu0 %v342
      %1102 = vmatprep.subr.bf16.mxu0 0
      %1103 = vmatpush1.bf16.msra.mxu0 %v343
      %1104 = vmatprep.subr.bf16.mxu0 0
      %1105 = vmatpush1.bf16.msra.mxu0 %v344
      %1106 = vmatprep.subr.bf16.mxu0 0
      %1107 = vmatpush1.bf16.msra.mxu0 %v345
      %1108 = vmatprep.subr.bf16.mxu0 0
      %1109 = vmatpush1.bf16.msra.mxu0 %v346
      %1110 = vmatprep.subr.bf16.mxu0 0
      %1111 = vmatpush1.bf16.msra.mxu0 %v347
      %1112 = vmatprep.subr.bf16.mxu0 0
      %1113 = vmatpush1.bf16.msra.mxu0 %v348
      %1114 = vmatprep.subr.bf16.mxu0 0
      %1115 = vmatpush1.bf16.msra.mxu0 %v349
      %1116 = vmatprep.subr.bf16.mxu0 0
      %1117 = vmatpush1.bf16.msra.mxu0 %v350
      %1118 = vmatprep.subr.bf16.mxu0 0
      %1119 = vmatpush1.bf16.msra.mxu0 %v351
      %1120 = vmatprep.subr.bf16.mxu0 0
      %1121 = vmatpush1.bf16.msra.mxu0 %v352
      %1122 = vmatprep.mubr.bf16.mxu0 %v804
      %1123 = vmatmul.mubr.bf16.gmra.mrb[0].mxu0 %v803
      %v1124 = vpop.f32.mrb[0].mxu0
      %v1125 = vadd.f32 %v964, %v1124
      %v1126 = vpop.f32.mrb[0].mxu0
      %v1127 = vpop.f32.mrb[0].mxu0
      %v1128 = vadd.f32 %v967, %v1127
      %v1129 = vpop.f32.mrb[0].mxu0
      %1130 = vmatprep.mubr.bf16.mxu0 %v808
      %1131 = vmatmul.mubr.bf16.gmra.mrb[0].mxu0 %v807
      %v1132 = vpop.f32.mrb[0].mxu0
      %v1133 = vadd.f32 %v972, %v1132
      %v1134 = vpop.f32.mrb[0].mxu0
      %v1135 = vpop.f32.mrb[0].mxu0
      %v1136 = vadd.f32 %v975, %v1135
      %v1137 = vpop.f32.mrb[0].mxu0
      %1138 = vmatprep.mubr.bf16.mxu0 %v812
      %1139 = vmatmul.mubr.bf16.gmra.mrb[0].mxu0 %v811
      %v1140 = vpop.f32.mrb[0].mxu0
      %v1141 = vadd.f32 %v980, %v1140
      %v1142 = vpop.f32.mrb[0].mxu0
      %v1143 = vpop.f32.mrb[0].mxu0
      %v1144 = vadd.f32 %v983, %v1143
      %v1145 = vpop.f32.mrb[0].mxu0
      %1146 = vmatprep.mubr.bf16.mxu0 %v816
      %1147 = vmatmul.mubr.bf16.gmra.mrb[0].mxu0 %v815
      %v1148 = vpop.f32.mrb[0].mxu0
      %v1149 = vadd.f32 %v988, %v1148
      %v1150 = vpop.f32.mrb[0].mxu0
      %v1151 = vpop.f32.mrb[0].mxu0
      %v1152 = vadd.f32 %v991, %v1151
      %v1153 = vpop.f32.mrb[0].mxu0
      %1154 = vmatprep.mubr.bf16.mxu0 %v820
      %1155 = vmatmul.mubr.bf16.gmra.mrb[0].mxu0 %v819
      %v1156 = vpop.f32.mrb[0].mxu0
      %v1157 = vadd.f32 %v996, %v1156
      %v1158 = vpop.f32.mrb[0].mxu0
      %v1159 = vpop.f32.mrb[0].mxu0
      %v1160 = vadd.f32 %v999, %v1159
      %v1161 = vpop.f32.mrb[0].mxu0
      %1162 = vmatprep.mubr.bf16.mxu0 %v824
      %1163 = vmatmul.mubr.bf16.gmra.mrb[0].mxu0 %v823
      %v1164 = vpop.f32.mrb[0].mxu0
      %v1165 = vadd.f32 %v1004, %v1164
      %v1166 = vpop.f32.mrb[0].mxu0
      %v1167 = vpop.f32.mrb[0].mxu0
      %v1168 = vadd.f32 %v1007, %v1167
      %v1169 = vpop.f32.mrb[0].mxu0
      %1170 = vmatprep.mubr.bf16.mxu0 %v828
      %1171 = vmatmul.mubr.bf16.gmra.mrb[0].mxu0 %v827
      %v1172 = vpop.f32.mrb[0].mxu0
      %v1173 = vadd.f32 %v1012, %v1172
      %v1174 = vpop.f32.mrb[0].mxu0
      %v1175 = vpop.f32.mrb[0].mxu0
      %v1176 = vadd.f32 %v1015, %v1175
      %v1177 = vpop.f32.mrb[0].mxu0
      %1178 = vmatprep.mubr.bf16.mxu0 %v832
      %1179 = vmatmul.mubr.bf16.gmra.mrb[0].mxu0 %v831
      %v1180 = vpop.f32.mrb[0].mxu0
      %v1181 = vadd.f32 %v1020, %v1180
      %v1182 = vpop.f32.mrb[0].mxu0
      %v1183 = vpop.f32.mrb[0].mxu0
      %v1184 = vadd.f32 %v1023, %v1183
      %v1185 = vpop.f32.mrb[0].mxu0
      %1186 = vmatprep.mubr.bf16.mxu0 %v836
      %1187 = vmatmul.mubr.bf16.gmra.mrb[0].mxu0 %v835
      %v1188 = vpop.f32.mrb[0].mxu0
      %v1189 = vadd.f32 %v1028, %v1188
      %v1190 = vpop.f32.mrb[0].mxu0
      %v1191 = vpop.f32.mrb[0].mxu0
      %v1192 = vadd.f32 %v1031, %v1191
      %v1193 = vpop.f32.mrb[0].mxu0
      %1194 = vmatprep.mubr.bf16.mxu0 %v840
      %1195 = vmatmul.mubr.bf16.gmra.mrb[0].mxu0 %v839
      %v1196 = vpop.f32.mrb[0].mxu0
      %v1197 = vadd.f32 %v1036, %v1196
      %v1198 = vpop.f32.mrb[0].mxu0
      %v1199 = vpop.f32.mrb[0].mxu0
      %v1200 = vadd.f32 %v1039, %v1199
      %v1201 = vpop.f32.mrb[0].mxu0
      %1202 = vmatprep.mubr.bf16.mxu0 %v844
      %1203 = vmatmul.mubr.bf16.gmra.mrb[0].mxu0 %v843
      %v1204 = vpop.f32.mrb[0].mxu0
      %v1205 = vadd.f32 %v1044, %v1204
      %v1206 = vpop.f32.mrb[0].mxu0
      %v1207 = vpop.f32.mrb[0].mxu0
      %v1208 = vadd.f32 %v1047, %v1207
      %v1209 = vpop.f32.mrb[0].mxu0
      %1210 = vmatprep.mubr.bf16.mxu0 %v848
      %1211 = vmatmul.mubr.bf16.gmra.mrb[0].mxu0 %v847
      %v1212 = vpop.f32.mrb[0].mxu0
      %v1213 = vadd.f32 %v1052, %v1212
      %v1214 = vpop.f32.mrb[0].mxu0
      %v1215 = vpop.f32.mrb[0].mxu0
      %v1216 = vadd.f32 %v1055, %v1215
      %v1217 = vpop.f32.mrb[0].mxu0
      %1218 = vmatprep.mubr.bf16.mxu0 %v852
      %1219 = vmatmul.mubr.bf16.gmra.mrb[0].mxu0 %v851
      %v1220 = vpop.f32.mrb[0].mxu0
      %v1221 = vadd.f32 %v1060, %v1220
      %v1222 = vpop.f32.mrb[0].mxu0
      %v1223 = vpop.f32.mrb[0].mxu0
      %v1224 = vadd.f32 %v1063, %v1223
      %v1225 = vpop.f32.mrb[0].mxu0
      %1226 = vmatprep.mubr.bf16.mxu0 %v856
      %1227 = vmatmul.mubr.bf16.gmra.mrb[0].mxu0 %v855
      %v1228 = vpop.f32.mrb[0].mxu0
      %v1229 = vadd.f32 %v1068, %v1228
      %v1230 = vpop.f32.mrb[0].mxu0
      %v1231 = vpop.f32.mrb[0].mxu0
      %v1232 = vadd.f32 %v1071, %v1231
      %v1233 = vpop.f32.mrb[0].mxu0
      %1234 = vmatprep.mubr.bf16.mxu0 %v860
      %1235 = vmatmul.mubr.bf16.gmra.mrb[0].mxu0 %v859
      %v1236 = vpop.f32.mrb[0].mxu0
      %v1237 = vadd.f32 %v1076, %v1236
      %v1238 = vpop.f32.mrb[0].mxu0
      %v1239 = vpop.f32.mrb[0].mxu0
      %v1240 = vadd.f32 %v1079, %v1239
      %v1241 = vpop.f32.mrb[0].mxu0
      %1242 = vmatprep.mubr.bf16.mxu0 %v864
      %1243 = vmatmul.mubr.bf16.gmra.mrb[0].mxu0 %v863
      %v1244 = vpop.f32.mrb[0].mxu0
      %v1245 = vadd.f32 %v1084, %v1244
      %v1246 = vpop.f32.mrb[0].mxu0
      %v1247 = vpop.f32.mrb[0].mxu0
      %v1248 = vadd.f32 %v1087, %v1247
      %v1249 = vpop.f32.mrb[0].mxu0
      %1250 = vdwg.mxu0
      %v1251 = vmul.f32 %v1125, 0.1
      %v1252 = vmul.f32 %v1128, 0.1
      %v1253 = vmul.f32 %v1133, 0.1
      %v1254 = vmul.f32 %v1136, 0.1
      %v1255 = vmul.f32 %v1141, 0.1
      %v1256 = vmul.f32 %v1144, 0.1
      %v1257 = vmul.f32 %v1149, 0.1
      %v1258 = vmul.f32 %v1152, 0.1
      %v1259 = vmul.f32 %v1157, 0.1
      %v1260 = vmul.f32 %v1160, 0.1
      %v1261 = vmul.f32 %v1165, 0.1
      %v1262 = vmul.f32 %v1168, 0.1
      %v1263 = vmul.f32 %v1173, 0.1
      %v1264 = vmul.f32 %v1176, 0.1
      %v1265 = vmul.f32 %v1181, 0.1
      %v1266 = vmul.f32 %v1184, 0.1
      %v1267 = vmul.f32 %v1189, 0.1
      %v1268 = vmul.f32 %v1192, 0.1
      %v1269 = vmul.f32 %v1197, 0.1
      %v1270 = vmul.f32 %v1200, 0.1
      %v1271 = vmul.f32 %v1205, 0.1
      %v1272 = vmul.f32 %v1208, 0.1
      %v1273 = vmul.f32 %v1213, 0.1
      %v1274 = vmul.f32 %v1216, 0.1
      %v1275 = vmul.f32 %v1221, 0.1
      %v1276 = vmul.f32 %v1224, 0.1
      %v1277 = vmul.f32 %v1229, 0.1
      %v1278 = vmul.f32 %v1232, 0.1
      %v1279 = vmul.f32 %v1237, 0.1
      %v1280 = vmul.f32 %v1240, 0.1
      %v1281 = vmul.f32 %v1245, 0.1
      %v1282 = vmul.f32 %v1248, 0.1
      %v1283 = vmax.f32 %v1125, %v1251
      %v1284 = vmax.f32 %v1128, %v1252
      %v1285 = vmax.f32 %v1133, %v1253
      %v1286 = vmax.f32 %v1136, %v1254
      %v1287 = vmax.f32 %v1141, %v1255
      %v1288 = vmax.f32 %v1144, %v1256
      %v1289 = vmax.f32 %v1149, %v1257
      %v1290 = vmax.f32 %v1152, %v1258
      %v1291 = vmax.f32 %v1157, %v1259
      %v1292 = vmax.f32 %v1160, %v1260
      %v1293 = vmax.f32 %v1165, %v1261
      %v1294 = vmax.f32 %v1168, %v1262
      %v1295 = vmax.f32 %v1173, %v1263
      %v1296 = vmax.f32 %v1176, %v1264
      %v1297 = vmax.f32 %v1181, %v1265
      %v1298 = vmax.f32 %v1184, %v1266
      %v1299 = vmax.f32 %v1189, %v1267
      %v1300 = vmax.f32 %v1192, %v1268
      %v1301 = vmax.f32 %v1197, %v1269
      %v1302 = vmax.f32 %v1200, %v1270
      %v1303 = vmax.f32 %v1205, %v1271
      %v1304 = vmax.f32 %v1208, %v1272
      %v1305 = vmax.f32 %v1213, %v1273
      %v1306 = vmax.f32 %v1216, %v1274
      %v1307 = vmax.f32 %v1221, %v1275
      %v1308 = vmax.f32 %v1224, %v1276
      %v1309 = vmax.f32 %v1229, %v1277
      %v1310 = vmax.f32 %v1232, %v1278
      %v1311 = vmax.f32 %v1237, %v1279
      %v1312 = vmax.f32 %v1240, %v1280
      %v1313 = vmax.f32 %v1245, %v1281
      %v1314 = vmax.f32 %v1248, %v1282
      %v1315 = vld [vmem:[%s3] sm:$0xff]
      %v1316 = vld [vmem:[%s3 + $0x8] sm:$0xff]
      %v1317 = vld [vmem:[%s3 + $0x10] sm:$0xff]
      %v1318 = vld [vmem:[%s3 + $0x18] sm:$0xff]
      %v1319 = vld [vmem:[%s3 + $0x20] sm:$0xff]
      %v1320 = vld [vmem:[%s3 + $0x28] sm:$0xff]
      %v1321 = vld [vmem:[%s3 + $0x30] sm:$0xff]
      %v1322 = vld [vmem:[%s3 + $0x38] sm:$0xff]
      %v1323 = vld [vmem:[%s3 + $0x40] sm:$0xff]
      %v1324 = vld [vmem:[%s3 + $0x48] sm:$0xff]
      %v1325 = vld [vmem:[%s3 + $0x50] sm:$0xff]
      %v1326 = vld [vmem:[%s3 + $0x58] sm:$0xff]
      %v1327 = vld [vmem:[%s3 + $0x60] sm:$0xff]
      %v1328 = vld [vmem:[%s3 + $0x68] sm:$0xff]
      %v1329 = vld [vmem:[%s3 + $0x70] sm:$0xff]
      %v1330 = vld [vmem:[%s3 + $0x78] sm:$0xff]
      %v1331 = vpack.c.bf16 %v1284, %v1283
      %v1332 = vpack.c.bf16 %v1286, %v1285
      %v1333 = vpack.c.bf16 %v1288, %v1287
      %v1334 = vpack.c.bf16 %v1290, %v1289
      %v1335 = vpack.c.bf16 %v1292, %v1291
      %v1336 = vpack.c.bf16 %v1294, %v1293
      %v1337 = vpack.c.bf16 %v1296, %v1295
      %v1338 = vpack.c.bf16 %v1298, %v1297
      %v1339 = vpack.c.bf16 %v1300, %v1299
      %v1340 = vpack.c.bf16 %v1302, %v1301
      %v1341 = vpack.c.bf16 %v1304, %v1303
      %v1342 = vpack.c.bf16 %v1306, %v1305
      %v1343 = vpack.c.bf16 %v1308, %v1307
      %v1344 = vpack.c.bf16 %v1310, %v1309
      %v1345 = vpack.c.bf16 %v1312, %v1311
      %v1346 = vpack.c.bf16 %v1314, %v1313
      %v1347 = vld [vmem:[%s4] sm:$0xff]
      %v1348 = vld [vmem:[%s4 + $0x8] sm:$0xff]
      %v1349 = vld [vmem:[%s4 + $0x10] sm:$0xff]
      %v1350 = vld [vmem:[%s4 + $0x18] sm:$0xff]
      %v1351 = vld [vmem:[%s4 + $0x20] sm:$0xff]
      %v1352 = vld [vmem:[%s4 + $0x28] sm:$0xff]
      %v1353 = vld [vmem:[%s4 + $0x30] sm:$0xff]
      %v1354 = vld [vmem:[%s4 + $0x38] sm:$0xff]
      %v1355 = vld [vmem:[%s4 + $0x40] sm:$0xff]
      %v1356 = vld [vmem:[%s4 + $0x48] sm:$0xff]
      %v1357 = vld [vmem:[%s4 + $0x50] sm:$0xff]
      %v1358 = vld [vmem:[%s4 + $0x58] sm:$0xff]
      %v1359 = vld [vmem:[%s4 + $0x60] sm:$0xff]
      %v1360 = vld [vmem:[%s4 + $0x68] sm:$0xff]
      %v1361 = vld [vmem:[%s4 + $0x70] sm:$0xff]
      %v1362 = vld [vmem:[%s4 + $0x78] sm:$0xff]
      %1364 = vset.pattern.permute.xlu0 0
      %1365 = vperm.xlu0 %1364, %v1347
      %v1366 = vpop.permute.xlu0 %1365
      %1369 = vset.pattern.permute.xlu0 0
      %1370 = vperm.xlu0 %1369, %v1348
      %v1371 = vpop.permute.xlu0 %1370
      %1374 = vset.pattern.permute.xlu0 0
      %1375 = vperm.xlu0 %1374, %v1349
      %v1376 = vpop.permute.xlu0 %1375
      %1379 = vset.pattern.permute.xlu0 0
      %1380 = vperm.xlu0 %1379, %v1350
      %v1381 = vpop.permute.xlu0 %1380
      %1384 = vset.pattern.permute.xlu0 0
      %1385 = vperm.xlu0 %1384, %v1351
      %v1386 = vpop.permute.xlu0 %1385
      %1389 = vset.pattern.permute.xlu0 0
      %1390 = vperm.xlu0 %1389, %v1352
      %v1391 = vpop.permute.xlu0 %1390
      %1394 = vset.pattern.permute.xlu0 0
      %1395 = vperm.xlu0 %1394, %v1353
      %v1396 = vpop.permute.xlu0 %1395
      %1399 = vset.pattern.permute.xlu0 0
      %1400 = vperm.xlu0 %1399, %v1354
      %v1401 = vpop.permute.xlu0 %1400
      %1404 = vset.pattern.permute.xlu0 0
      %1405 = vperm.xlu0 %1404, %v1355
      %v1406 = vpop.permute.xlu0 %1405
      %1409 = vset.pattern.permute.xlu0 0
      %1410 = vperm.xlu0 %1409, %v1356
      %v1411 = vpop.permute.xlu0 %1410
      %1414 = vset.pattern.permute.xlu0 0
      %1415 = vperm.xlu0 %1414, %v1357
      %v1416 = vpop.permute.xlu0 %1415
      %1419 = vset.pattern.permute.xlu0 0
      %1420 = vperm.xlu0 %1419, %v1358
      %v1421 = vpop.permute.xlu0 %1420
      %1424 = vset.pattern.permute.xlu0 0
      %1425 = vperm.xlu0 %1424, %v1359
      %v1426 = vpop.permute.xlu0 %1425
      %1429 = vset.pattern.permute.xlu0 0
      %1430 = vperm.xlu0 %1429, %v1360
      %v1431 = vpop.permute.xlu0 %1430
      %1434 = vset.pattern.permute.xlu0 0
      %1435 = vperm.xlu0 %1434, %v1361
      %v1436 = vpop.permute.xlu0 %1435
      %1439 = vset.pattern.permute.xlu0 0
      %1440 = vperm.xlu0 %1439, %v1362
      %v1441 = vpop.permute.xlu0 %1440
      %v1459 = vunpack.c.l.b16 %v1315
      %v1460 = vunpack.c.h.b16 %v1315
      %v1461 = vunpack.c.l.b16 %v1316
      %v1462 = vunpack.c.h.b16 %v1316
      %v1463 = vunpack.c.l.b16 %v1317
      %v1464 = vunpack.c.h.b16 %v1317
      %v1465 = vunpack.c.l.b16 %v1318
      %v1466 = vunpack.c.h.b16 %v1318
      %v1467 = vunpack.c.l.b16 %v1319
      %v1468 = vunpack.c.h.b16 %v1319
      %v1469 = vunpack.c.l.b16 %v1320
      %v1470 = vunpack.c.h.b16 %v1320
      %v1471 = vunpack.c.l.b16 %v1321
      %v1472 = vunpack.c.h.b16 %v1321
      %v1473 = vunpack.c.l.b16 %v1322
      %v1474 = vunpack.c.h.b16 %v1322
      %v1475 = vunpack.c.l.b16 %v1323
      %v1476 = vunpack.c.h.b16 %v1323
      %v1477 = vunpack.c.l.b16 %v1324
      %v1478 = vunpack.c.h.b16 %v1324
      %v1479 = vunpack.c.l.b16 %v1325
      %v1480 = vunpack.c.h.b16 %v1325
      %v1481 = vunpack.c.l.b16 %v1326
      %v1482 = vunpack.c.h.b16 %v1326
      %v1483 = vunpack.c.l.b16 %v1327
      %v1484 = vunpack.c.h.b16 %v1327
      %v1485 = vunpack.c.l.b16 %v1328
      %v1486 = vunpack.c.h.b16 %v1328
      %v1487 = vunpack.c.l.b16 %v1329
      %v1488 = vunpack.c.h.b16 %v1329
      %v1489 = vunpack.c.l.b16 %v1330
      %v1490 = vunpack.c.h.b16 %v1330
      %v1491 = vpack.c.b16 %v1461, %v1459
      %v1492 = vpack.c.b16 %v1462, %v1460
      %v1493 = vpack.c.b16 %v1465, %v1463
      %v1494 = vpack.c.b16 %v1466, %v1464
      %v1495 = vpack.c.b16 %v1469, %v1467
      %v1496 = vpack.c.b16 %v1470, %v1468
      %v1497 = vpack.c.b16 %v1473, %v1471
      %v1498 = vpack.c.b16 %v1474, %v1472
      %v1499 = vpack.c.b16 %v1477, %v1475
      %v1500 = vpack.c.b16 %v1478, %v1476
      %v1501 = vpack.c.b16 %v1481, %v1479
      %v1502 = vpack.c.b16 %v1482, %v1480
      %v1503 = vpack.c.b16 %v1485, %v1483
      %v1504 = vpack.c.b16 %v1486, %v1484
      %v1505 = vpack.c.b16 %v1489, %v1487
      %v1506 = vpack.c.b16 %v1490, %v1488
      %1523 = vmatprep.subr.bf16.mxu0 0
      %1524 = vmatpush1.bf16.msra.mxu0 %v1331
      %1525 = vmatprep.subr.bf16.mxu0 0
      %1526 = vmatpush1.bf16.msra.mxu0 %v1332
      %1527 = vmatprep.subr.bf16.mxu0 0
      %1528 = vmatpush1.bf16.msra.mxu0 %v1333
      %1529 = vmatprep.subr.bf16.mxu0 0
      %1530 = vmatpush1.bf16.msra.mxu0 %v1334
      %1531 = vmatprep.subr.bf16.mxu0 0
      %1532 = vmatpush1.bf16.msra.mxu0 %v1335
      %1533 = vmatprep.subr.bf16.mxu0 0
      %1534 = vmatpush1.bf16.msra.mxu0 %v1336
      %1535 = vmatprep.subr.bf16.mxu0 0
      %1536 = vmatpush1.bf16.msra.mxu0 %v1337
      %1537 = vmatprep.subr.bf16.mxu0 0
      %1538 = vmatpush1.bf16.msra.mxu0 %v1338
      %1539 = vmatprep.subr.bf16.mxu0 0
      %1540 = vmatpush1.bf16.msra.mxu0 %v1339
      %1541 = vmatprep.subr.bf16.mxu0 0
      %1542 = vmatpush1.bf16.msra.mxu0 %v1340
      %1543 = vmatprep.subr.bf16.mxu0 0
      %1544 = vmatpush1.bf16.msra.mxu0 %v1341
      %1545 = vmatprep.subr.bf16.mxu0 0
      %1546 = vmatpush1.bf16.msra.mxu0 %v1342
      %1547 = vmatprep.subr.bf16.mxu0 0
      %1548 = vmatpush1.bf16.msra.mxu0 %v1343
      %1549 = vmatprep.subr.bf16.mxu0 0
      %1550 = vmatpush1.bf16.msra.mxu0 %v1344
      %1551 = vmatprep.subr.bf16.mxu0 0
      %1552 = vmatpush1.bf16.msra.mxu0 %v1345
      %1553 = vmatprep.subr.bf16.mxu0 0
      %1554 = vmatpush1.bf16.msra.mxu0 %v1346
      %1555 = vmatprep.mubr.bf16.mxu0 %v1492
      %1556 = vmatmul.mubr.bf16.gmra.mrb[0].mxu0 %v1491
      %v1557 = vpop.f32.mrb[0].mxu0
      %v1558 = vadd.f32 %v1366, %v1557
      %v1559 = vpop.f32.mrb[0].mxu0
      %v1560 = vpop.f32.mrb[0].mxu0
      %v1561 = vadd.f32 %v1371, %v1560
      %v1562 = vpop.f32.mrb[0].mxu0
      %1563 = vmatprep.mubr.bf16.mxu0 %v1494
      %1564 = vmatmul.mubr.bf16.gmra.mrb[0].mxu0 %v1493
      %v1565 = vpop.f32.mrb[0].mxu0
      %v1566 = vadd.f32 %v1376, %v1565
      %v1567 = vpop.f32.mrb[0].mxu0
      %v1568 = vpop.f32.mrb[0].mxu0
      %v1569 = vadd.f32 %v1381, %v1568
      %v1570 = vpop.f32.mrb[0].mxu0
      %1571 = vmatprep.mubr.bf16.mxu0 %v1496
      %1572 = vmatmul.mubr.bf16.gmra.mrb[0].mxu0 %v1495
      %v1573 = vpop.f32.mrb[0].mxu0
      %v1574 = vadd.f32 %v1386, %v1573
      %v1575 = vpop.f32.mrb[0].mxu0
      %v1576 = vpop.f32.mrb[0].mxu0
      %v1577 = vadd.f32 %v1391, %v1576
      %v1578 = vpop.f32.mrb[0].mxu0
      %1579 = vmatprep.mubr.bf16.mxu0 %v1498
      %1580 = vmatmul.mubr.bf16.gmra.mrb[0].mxu0 %v1497
      %v1581 = vpop.f32.mrb[0].mxu0
      %v1582 = vadd.f32 %v1396, %v1581
      %v1583 = vpop.f32.mrb[0].mxu0
      %v1584 = vpop.f32.mrb[0].mxu0
      %v1585 = vadd.f32 %v1401, %v1584
      %v1586 = vpop.f32.mrb[0].mxu0
      %1587 = vmatprep.mubr.bf16.mxu0 %v1500
      %1588 = vmatmul.mubr.bf16.gmra.mrb[0].mxu0 %v1499
      %v1589 = vpop.f32.mrb[0].mxu0
      %v1590 = vadd.f32 %v1406, %v1589
      %v1591 = vpop.f32.mrb[0].mxu0
      %v1592 = vpop.f32.mrb[0].mxu0
      %v1593 = vadd.f32 %v1411, %v1592
      %v1594 = vpop.f32.mrb[0].mxu0
      %1595 = vmatprep.mubr.bf16.mxu0 %v1502
      %1596 = vmatmul.mubr.bf16.gmra.mrb[0].mxu0 %v1501
      %v1597 = vpop.f32.mrb[0].mxu0
      %v1598 = vadd.f32 %v1416, %v1597
      %v1599 = vpop.f32.mrb[0].mxu0
      %v1600 = vpop.f32.mrb[0].mxu0
      %v1601 = vadd.f32 %v1421, %v1600
      %v1602 = vpop.f32.mrb[0].mxu0
      %1603 = vmatprep.mubr.bf16.mxu0 %v1504
      %1604 = vmatmul.mubr.bf16.gmra.mrb[0].mxu0 %v1503
      %v1605 = vpop.f32.mrb[0].mxu0
      %v1606 = vadd.f32 %v1426, %v1605
      %v1607 = vpop.f32.mrb[0].mxu0
      %v1608 = vpop.f32.mrb[0].mxu0
      %v1609 = vadd.f32 %v1431, %v1608
      %v1610 = vpop.f32.mrb[0].mxu0
      %1611 = vmatprep.mubr.bf16.mxu0 %v1506
      %1612 = vmatmul.mubr.bf16.gmra.mrb[0].mxu0 %v1505
      %v1613 = vpop.f32.mrb[0].mxu0
      %v1614 = vadd.f32 %v1436, %v1613
      %v1615 = vpop.f32.mrb[0].mxu0
      %v1616 = vpop.f32.mrb[0].mxu0
      %v1617 = vadd.f32 %v1441, %v1616
      %v1618 = vpop.f32.mrb[0].mxu0
      %1619 = vdwg.mxu0
      %v1620 = vmul.f32 %v1558, 0.1
      %v1621 = vmul.f32 %v1561, 0.1
      %v1622 = vmul.f32 %v1566, 0.1
      %v1623 = vmul.f32 %v1569, 0.1
      %v1624 = vmul.f32 %v1574, 0.1
      %v1625 = vmul.f32 %v1577, 0.1
      %v1626 = vmul.f32 %v1582, 0.1
      %v1627 = vmul.f32 %v1585, 0.1
      %v1628 = vmul.f32 %v1590, 0.1
      %v1629 = vmul.f32 %v1593, 0.1
      %v1630 = vmul.f32 %v1598, 0.1
      %v1631 = vmul.f32 %v1601, 0.1
      %v1632 = vmul.f32 %v1606, 0.1
      %v1633 = vmul.f32 %v1609, 0.1
      %v1634 = vmul.f32 %v1614, 0.1
      %v1635 = vmul.f32 %v1617, 0.1
      %v1636 = vmax.f32 %v1558, %v1620
      %v1637 = vmax.f32 %v1561, %v1621
      %v1638 = vmax.f32 %v1566, %v1622
      %v1639 = vmax.f32 %v1569, %v1623
      %v1640 = vmax.f32 %v1574, %v1624
      %v1641 = vmax.f32 %v1577, %v1625
      %v1642 = vmax.f32 %v1582, %v1626
      %v1643 = vmax.f32 %v1585, %v1627
      %v1644 = vmax.f32 %v1590, %v1628
      %v1645 = vmax.f32 %v1593, %v1629
      %v1646 = vmax.f32 %v1598, %v1630
      %v1647 = vmax.f32 %v1601, %v1631
      %v1648 = vmax.f32 %v1606, %v1632
      %v1649 = vmax.f32 %v1609, %v1633
      %v1650 = vmax.f32 %v1614, %v1634
      %v1651 = vmax.f32 %v1617, %v1635
      %vm1652 = vcmask 523264
      %1653 = vst.msk [vmem:[%s255] sm:$0xff] %vm1652, %v1636
      %1654 = vst.msk [vmem:[%s255 + $0x8] sm:$0xff] %vm1652, %v1637
      %1655 = vst.msk [vmem:[%s255 + $0x10] sm:$0xff] %vm1652, %v1638
      %1656 = vst.msk [vmem:[%s255 + $0x18] sm:$0xff] %vm1652, %v1639
      %1657 = vst.msk [vmem:[%s255 + $0x20] sm:$0xff] %vm1652, %v1640
      %1658 = vst.msk [vmem:[%s255 + $0x28] sm:$0xff] %vm1652, %v1641
      %1659 = vst.msk [vmem:[%s255 + $0x30] sm:$0xff] %vm1652, %v1642
      %1660 = vst.msk [vmem:[%s255 + $0x38] sm:$0xff] %vm1652, %v1643
      %1661 = vst.msk [vmem:[%s255 + $0x40] sm:$0xff] %vm1652, %v1644
      %1662 = vst.msk [vmem:[%s255 + $0x48] sm:$0xff] %vm1652, %v1645
      %1663 = vst.msk [vmem:[%s255 + $0x50] sm:$0xff] %vm1652, %v1646
      %1664 = vst.msk [vmem:[%s255 + $0x58] sm:$0xff] %vm1652, %v1647
      %1665 = vst.msk [vmem:[%s255 + $0x60] sm:$0xff] %vm1652, %v1648
      %1666 = vst.msk [vmem:[%s255 + $0x68] sm:$0xff] %vm1652, %v1649
      %1667 = vst.msk [vmem:[%s255 + $0x70] sm:$0xff] %vm1652, %v1650
      %1668 = vst.msk [vmem:[%s255 + $0x78] sm:$0xff] %vm1652, %v1651
      %p1669 = scmp.lt.s32.totalorder %s20, 1
      %s1670 = scalar_select %p1669, %s20, 1
      %p1671 = scmp.lt.s32.totalorder %s21, 0
      %s1672 = scalar_select %p1671, %s21, 0
      %s1673 = smul.addr %s1670, 16
      %s1674 = sadd.s32 %s1672, %s1673
      %s1675 = smul.addr %s1674, 8
      %s1676 = scalar_lea.vmem %s5, %s1675
      // Predicated region
      $region41: #{_lambda_.1} parent=39 // pred_check
        %p1677 = pneg %p160
      $region42: #{_lambda_.1} parent=39 // pred_check_branch
        %1679 = sbr.rel (%p1677) target = $region44
      $region43: #{_lambda_.1} parent=39 // pred_region
        _
      $region44: #{_lambda_.1} parent=39 // pred_fallthru
        _
    $region40: #{_lambda_.1} parent=5 // pred_fallthru
      _
    %p1680 = scmp.le.s32.totalorder 2, %s11
    // Predicated region
    $region45: #{_lambda_.1} parent=5 // pred_check
      %p1681 = pneg %p1680
    $region46: #{_lambda_.1} parent=5 // pred_check_branch
      %1683 = sbr.rel (%p1681) target = $region48
    $region47: #{_lambda_.1} parent=5 // pred_region
      %s1684 = ssub.s32 %s11, 2
      // Predicated region
      $region49: #{_lambda_.1} parent=47 // pred_check
        %p1685 = pneg %p166
      $region50: #{_lambda_.1} parent=47 // pred_check_branch
        %1687 = sbr.rel (%p1685) target = $region52
      $region51: #{_lambda_.1} parent=47 // pred_region
        %p1688 = scmp.lt.s32.totalorder %s22, 1
        %s1689 = scalar_select %p1688, %s22, 1
        %p1690 = scmp.lt.s32.totalorder %s23, 0
        %s1691 = scalar_select %p1690, %s23, 0
        %s1692 = smul.addr %s1689, 16
        %s1693 = sadd.s32 %s1691, %s1692
        %s1694 = smul.addr %s1693, 8
        %s1695 = scalar_lea.vmem %s5, %s1694
      $region52: #{_lambda_.1} parent=47 // pred_fallthru
        _
    $region48: #{_lambda_.1} parent=5 // pred_fallthru
      _
  $region6: #{_lambda_.1} parent=0 // loop_footer
    %s15 = sadd.s32 1, %s11
  $region7: #{_lambda_.1} parent=0 // loop_footer_branch
    %10 = sbr.rel target = $region3
  $region8: #{_lambda_.1} parent=0 // loop_exit
    _

</llo_original>
